<compile_context>
chip_gen: v7x
topology: tpu7x:2x2x1
jax: 0.10.0
libtpu: 0.0.40
codegen_flags: <defaults>
</compile_context>

<pallas_src>
import functools

import jax
import jax.numpy as jnp
from jax import lax
from jax.experimental import pallas as pl
from jax.experimental.pallas import tpu as pltpu


# ---------------------------------------------------------------------------
# Pallas kernel: one batch tile (TB samples) per grid step.
# ---------------------------------------------------------------------------
def digitcaps_kernel(x_ref, w_ref, mask_ref, seg_ref, col_ref, expd_ref,
                     v_ref, v1_ref, v2_ref, *,
                     in_caps, in_dim, out_caps, out_dim, num_routing,
                     batch_tile, matmul_dtype):
    I, K, J, D, TB = in_caps, in_dim, out_caps, out_dim, batch_tile
    JD = J * D
    TBI = TB * I
    inv_D = 1.0 / D
    mm = matmul_dtype
    f32 = jnp.float32

    seg = seg_ref[...]     # (JD, JD) 0/1: per-capsule sum, replicated over D
    col = col_ref[...]     # (JD, J)  0/1: per-capsule sum, de-replicated
    expd = expd_ref[...]   # (J, JD)  0/1: expand a per-capsule scalar over D

    # ---- u_hat: one block-diagonal bf16 MXU matmul for the whole tile ------
    #   x_blk[t*I+i, i*K+k] = x[t,i,k];  W2[i*K+k, j*D+d] = W[0,j,i,d,k]
    x2 = x_ref[...].astype(mm).reshape(TBI, K)
    x_blk = (jnp.tile(x2, (1, I)).reshape(TB, I, I * K)
             * mask_ref[...]).reshape(TBI, I * K)                 # bf16, half width
    uh2 = jnp.dot(x_blk, w_ref[...], preferred_element_type=f32)  # (TBI, JD) f32

    # ---- routing-loop-invariant Pearson pieces (u_hat centered over D) -----
    uh_mean = jnp.dot(uh2.astype(mm), seg, preferred_element_type=f32) * inv_D
    a_uh = uh2 - uh_mean                                          # (TBI, JD) f32
    a_sq = jnp.dot((a_uh * a_uh).astype(mm), col,
                   preferred_element_type=f32)                    # (TBI, J)

    def rep_i(t):
        # replicate a per-sample (TB, L) tensor over the in_caps rows
        L = t.shape[-1]
        return jnp.broadcast_to(t[:, None, :], (TB, I, L)).reshape(TBI, L)

    def routing_weights(logits):
        # softmax over the J out-capsules; logits are bounded by num_routing-1
        # (|pearson| <= 1 per iteration), so exp needs no max-subtraction.
        e = jnp.exp(logits)                                       # (TBI, J)
        denom = jnp.sum(e, axis=-1, keepdims=True)
        return e * pl.reciprocal(denom, approx=True)

    def weighted_sum(c_j):
        # s[t, j*D+d] = sum_i c[t,i,j] * u_hat[t,i,j,d]  -> de-replicated (TB, JD)
        c_exp = jnp.dot(c_j.astype(mm), expd, preferred_element_type=f32)
        return jnp.sum((c_exp * uh2).reshape(TB, I, JD), axis=1)

    def squash(s):
        # squash over D per out-capsule on (TB, JD); returns (v, s*s)
        ss = s * s
        sq = jnp.dot(ss.astype(mm), seg, preferred_element_type=f32)  # (TB, JD)
        inv1 = pl.reciprocal(1.0 + sq, approx=True)
        return s * jnp.sqrt(sq) * inv1, ss    # == (sq/(1+sq)) * s / sqrt(sq)

    def pearson(v):
        # Pearson(u_hat[t,i,j,:], v[t,j,:]) -> (TBI, J).  Only a_uh*vc needs
        # in_caps-replicated rows; everything else stays per-sample (TB, ...).
        vmean = jnp.dot(v.astype(mm), seg, preferred_element_type=f32) * inv_D
        vc = v - vmean                                            # (TB, JD)
        vsq = jnp.dot((vc * vc).astype(mm), col,
                      preferred_element_type=f32)                 # (TB, J)
        prod = a_uh * rep_i(vc)                                   # (TBI, JD) f32
        num = jnp.dot(prod.astype(mm), col, preferred_element_type=f32)
        # tiny eps only guards zero-padded batch rows; negligible for real rows
        return num * lax.rsqrt(a_sq * rep_i(vsq) + 1e-30)         # (TBI, J)

    # ---- dynamic routing (num_routing is small: unrolled Python loop) ------
    logits = jnp.zeros((TBI, J), f32)
    v1 = v2 = p_j = None
    for route_iter in range(num_routing - 1):
        c_j = routing_weights(logits)
        s = weighted_sum(c_j)
        v, ss = squash(s)
        if route_iter == 0:
            v1 = v
        if route_iter == num_routing - 2:
            v2 = v
            sq_j = jnp.dot(ss.astype(mm), col, preferred_element_type=f32)
            p_j = sq_j * pl.reciprocal(1.0 + sq_j, approx=True)   # ||v2|| per capsule
        logits = logits + pearson(v)

    c_j = routing_weights(logits) * rep_i(p_j)
    s = weighted_sum(c_j)
    v, _ = squash(s)

    v_ref[...] = v
    v1_ref[...] = v1
    v2_ref[...] = v2


# ---------------------------------------------------------------------------
# wrapper
# ---------------------------------------------------------------------------
def digit_caps_forward(x, W, num_routing, *, batch_tile=None,
                       matmul_dtype=jnp.bfloat16):
    """Pallas forward of DigitCaps. Returns (v, v1, v2), each (B, out_caps, out_dim)."""
    # Matches the PyTorch module, which needs num_routing >= 3 (otherwise
    # p / v2 would be referenced before assignment).
    assert num_routing >= 3
    B, I, K = x.shape
    _, J, _, D, _ = W.shape
    JD = J * D
    x = x.astype(jnp.float32)

    # Batch tile: one grid step covers TB samples (TB*I MXU rows).  For B >= 16
    # the default picks >= 2 grid steps so both v7x TensorCores get work.
    if batch_tile is None:
        if B <= 8:
            batch_tile = B                                   # single step, no padding
        else:
            batch_tile = max(8, min(32, ((B + 1) // 2 + 7) // 8 * 8))
    TB = int(batch_tile)
    Bp = ((B + TB - 1) // TB) * TB
    if Bp > TB:
        assert TB % 8 == 0, "batch_tile must be a multiple of 8 when it tiles B"
    if Bp != B:
        x = jnp.concatenate([x, jnp.zeros((Bp - B, I, K), x.dtype)], axis=0)

    # W2[i*K + k, j*D + d] = W[0, j, i, d, k]  (lane-dense matmul RHS, bf16).
    W2 = jnp.transpose(W[0], (1, 3, 0, 2)).reshape(I * K, JD).astype(matmul_dtype)

    # Grid-invariant 0/1 constants (hoisted out of the kernel; exact in bf16):
    mask = (jnp.arange(I)[:, None] == jnp.arange(I * K)[None, :] // K
            ).astype(matmul_dtype)                               # (I, I*K) block-diag
    seg = (jnp.arange(JD)[:, None] // D == jnp.arange(JD)[None, :] // D
           ).astype(matmul_dtype)                                # (JD, JD)
    col = (jnp.arange(JD)[:, None] // D == jnp.arange(J)[None, :]
           ).astype(matmul_dtype)                                # (JD, J)
    expd = (jnp.arange(J)[:, None] == jnp.arange(JD)[None, :] // D
            ).astype(matmul_dtype)                               # (J, JD)

    kernel = functools.partial(
        digitcaps_kernel, in_caps=I, in_dim=K, out_caps=J, out_dim=D,
        num_routing=num_routing, batch_tile=TB, matmul_dtype=matmul_dtype)

    out_shape = tuple(jax.ShapeDtypeStruct((Bp, JD), jnp.float32)
                      for _ in range(3))

    grid_spec = pltpu.PrefetchScalarGridSpec(
        num_scalar_prefetch=0,
        grid=(Bp // TB,),
        in_specs=[
            pl.BlockSpec((TB, I, K), lambda b: (b, 0, 0)),       # x batch tile
            pl.BlockSpec((I * K, JD), lambda b: (0, 0)),         # W2 (grid-invariant)
            pl.BlockSpec((I, I * K), lambda b: (0, 0)),          # block-diag mask
            pl.BlockSpec((JD, JD), lambda b: (0, 0)),            # seg (sum, replicated)
            pl.BlockSpec((JD, J), lambda b: (0, 0)),             # col (sum, de-replicated)
            pl.BlockSpec((J, JD), lambda b: (0, 0)),             # expd (expand over D)
        ],
        out_specs=[
            pl.BlockSpec((TB, JD), lambda b: (b, 0)),            # lane-dense v
            pl.BlockSpec((TB, JD), lambda b: (b, 0)),            # lane-dense v1
            pl.BlockSpec((TB, JD), lambda b: (b, 0)),            # lane-dense v2
        ],
    )

    # Advisory cost hint: compute-bound custom call (rough but representative).
    flops = int(2 * Bp * I * K * JD + (num_routing + 1) * 8 * Bp * I * JD)
    transcend = int(num_routing * (Bp * I * J + 4 * Bp * JD))
    bytes_acc = int(4 * x.size + 2 * W2.size + 4 * 3 * Bp * JD
                    + 2 * (mask.size + seg.size + col.size + expd.size))

    v, v1, v2 = pl.pallas_call(
        kernel,
        out_shape=out_shape,
        grid_spec=grid_spec,
        compiler_params=pltpu.CompilerParams(
            dimension_semantics=("parallel",)),
        cost_estimate=pl.CostEstimate(flops=flops, transcendentals=transcend,
                                      bytes_accessed=bytes_acc),
    )(x, W2, mask, seg, col, expd)

    unpack = lambda t: t[:B].reshape(B, J, D)
    return unpack(v), unpack(v1), unpack(v2)


# ---------------------------------------------------------------------------
# pure-JAX reference (mirrors the PyTorch forward exactly)
# ---------------------------------------------------------------------------
def _squash_ref(t):
    sq = jnp.sum(t * t, axis=-1, keepdims=True)
    return (sq / (1.0 + sq)) * t / jnp.sqrt(sq)


def _pearson_ref(a, b):
    a = a - jnp.mean(a, axis=-1, keepdims=True)
    b = b - jnp.mean(b, axis=-1, keepdims=True)
    num = jnp.sum(a * b, axis=-1, keepdims=True)
    den = jnp.sqrt(jnp.sum(a * a, axis=-1, keepdims=True)) * jnp.sqrt(
        jnp.sum(b * b, axis=-1, keepdims=True))
    return num / den


def digitcaps_reference(x, W, num_routing):
    u_hat = jnp.einsum('zjidk,bik->bjid', W, x)                   # (B,J,I,D)
    B, J, I, D = u_hat.shape
    b = jnp.zeros((B, J, I, 1), jnp.float32)
    v1 = v2 = p = None
    for r in range(num_routing - 1):
        c = jax.nn.softmax(b, axis=1)
        s = jnp.sum(c * u_hat, axis=2)                            # (B,J,D)
        if r == 0:
            v1 = _squash_ref(s)
        else:
            v2 = _squash_ref(s)
            p = jnp.sqrt(jnp.sum(v2 * v2, axis=-1, keepdims=True))[:, :, None, :]
        v = _squash_ref(jnp.broadcast_to(s[:, :, None, :], u_hat.shape))
        b = b + _pearson_ref(u_hat, v)
    c = jax.nn.softmax(b, axis=1) * p
    s = jnp.sum(c * u_hat, axis=2)
    return _squash_ref(s), v1, v2


if __name__ == "__main__":
    # small shapes consistent with the module's __init__
    in_dim, in_caps, out_caps, out_dim, num_routing = 8, 32, 10, 16, 3
    batch = 2

    key = jax.random.PRNGKey(0)
    kx, kw = jax.random.split(key)
    x = jax.random.normal(kx, (batch, in_caps, in_dim), dtype=jnp.float32)
    W = 0.01 * jax.random.normal(
        kw, (1, out_caps, in_caps, out_dim, in_dim), dtype=jnp.float32)

    v, v1, v2 = digit_caps_forward(x, W, num_routing)
    jax.block_until_ready(v)
    jax.block_until_ready(v1)
    jax.block_until_ready(v2)

    rv, rv1, rv2 = digitcaps_reference(x, W, num_routing)
    for got, want in ((v, rv), (v1, rv1), (v2, rv2)):
        assert got.shape == want.shape
        err = float(jnp.max(jnp.abs(got - want)))
        assert err < 2e-3, err

    print("KERNEL_OK")
</pallas_src>

<mosaic_0001>
module attributes {stable_mosaic.version = 11 : i64} {
  func.func @digitcaps_kernel(%arg0: i32, %arg1: memref<2x32x8xf32, #tpu.memory_space<vmem>>, %arg2: memref<256x160xbf16, #tpu.memory_space<vmem>>, %arg3: memref<32x256xbf16, #tpu.memory_space<vmem>>, %arg4: memref<160x160xbf16, #tpu.memory_space<vmem>>, %arg5: memref<160x10xbf16, #tpu.memory_space<vmem>>, %arg6: memref<10x160xbf16, #tpu.memory_space<vmem>>, %arg7: memref<2x160xf32, #tpu.memory_space<vmem>>, %arg8: memref<2x160xf32, #tpu.memory_space<vmem>>, %arg9: memref<2x160xf32, #tpu.memory_space<vmem>>) attributes {dimension_semantics = [#tpu.dimension_semantics<parallel>], iteration_bounds = array<i64: 1>, scalar_prefetch = 0 : i64, scratch_operands = 0 : i64, tpu.core_type = #tpu.core_type<tc>, window_params = [{transform_indices = @transform_0, window_bounds = array<i64: 2, 32, 8>}, {pipeline_mode = #tpu.pipeline_mode<synchronous>, transform_indices = @transform_1, window_bounds = array<i64: 256, 160>}, {pipeline_mode = #tpu.pipeline_mode<synchronous>, transform_indices = @transform_2, window_bounds = array<i64: 32, 256>}, {pipeline_mode = #tpu.pipeline_mode<synchronous>, transform_indices = @transform_3, window_bounds = array<i64: 160, 160>}, {pipeline_mode = #tpu.pipeline_mode<synchronous>, transform_indices = @transform_4, window_bounds = array<i64: 160, 10>}, {pipeline_mode = #tpu.pipeline_mode<synchronous>, transform_indices = @transform_5, window_bounds = array<i64: 10, 160>}, {transform_indices = @transform_6, window_bounds = array<i64: 2, 160>}, {transform_indices = @transform_7, window_bounds = array<i64: 2, 160>}, {transform_indices = @transform_8, window_bounds = array<i64: 2, 160>}]} {
    %c0 = arith.constant 0 : index
    %c0_0 = arith.constant 0 : index
    %0 = vector.load %arg4[%c0, %c0_0] : memref<160x160xbf16, #tpu.memory_space<vmem>>, vector<160x160xbf16>
    %c0_1 = arith.constant 0 : index
    %c0_2 = arith.constant 0 : index
    %1 = vector.load %arg5[%c0_1, %c0_2] : memref<160x10xbf16, #tpu.memory_space<vmem>>, vector<160x10xbf16>
    %c0_3 = arith.constant 0 : index
    %c0_4 = arith.constant 0 : index
    %2 = vector.load %arg6[%c0_3, %c0_4] : memref<10x160xbf16, #tpu.memory_space<vmem>>, vector<10x160xbf16>
    %c0_5 = arith.constant 0 : index
    %c0_6 = arith.constant 0 : index
    %c0_7 = arith.constant 0 : index
    %3 = vector.load %arg1[%c0_5, %c0_6, %c0_7] : memref<2x32x8xf32, #tpu.memory_space<vmem>>, vector<2x32x8xf32>
    %4 = arith.truncf %3 : vector<2x32x8xf32> to vector<2x32x8xbf16>
    %5 = vector.shape_cast %4 : vector<2x32x8xbf16> to vector<64x8xbf16>
    %6 = tpu.concatenate %5, %5, %5, %5, %5, %5, %5, %5, %5, %5, %5, %5, %5, %5, %5, %5, %5, %5, %5, %5, %5, %5, %5, %5, %5, %5, %5, %5, %5, %5, %5, %5 in 1 : vector<64x8xbf16>, vector<64x8xbf16>, vector<64x8xbf16>, vector<64x8xbf16>, vector<64x8xbf16>, vector<64x8xbf16>, vector<64x8xbf16>, vector<64x8xbf16>, vector<64x8xbf16>, vector<64x8xbf16>, vector<64x8xbf16>, vector<64x8xbf16>, vector<64x8xbf16>, vector<64x8xbf16>, vector<64x8xbf16>, vector<64x8xbf16>, vector<64x8xbf16>, vector<64x8xbf16>, vector<64x8xbf16>, vector<64x8xbf16>, vector<64x8xbf16>, vector<64x8xbf16>, vector<64x8xbf16>, vector<64x8xbf16>, vector<64x8xbf16>, vector<64x8xbf16>, vector<64x8xbf16>, vector<64x8xbf16>, vector<64x8xbf16>, vector<64x8xbf16>, vector<64x8xbf16>, vector<64x8xbf16> -> vector<64x256xbf16>
    %7 = vector.shape_cast %6 : vector<64x256xbf16> to vector<2x32x256xbf16>
    %c0_8 = arith.constant 0 : index
    %c0_9 = arith.constant 0 : index
    %8 = vector.load %arg3[%c0_8, %c0_9] : memref<32x256xbf16, #tpu.memory_space<vmem>>, vector<32x256xbf16>
    %9 = vector.shape_cast %8 : vector<32x256xbf16> to vector<1x32x256xbf16>
    %10 = vector.broadcast %9 : vector<1x32x256xbf16> to vector<2x32x256xbf16>
    %11 = arith.mulf %7, %10 : vector<2x32x256xbf16>
    %12 = vector.shape_cast %11 : vector<2x32x256xbf16> to vector<64x256xbf16>
    %c0_10 = arith.constant 0 : index
    %c0_11 = arith.constant 0 : index
    %13 = vector.load %arg2[%c0_10, %c0_11] : memref<256x160xbf16, #tpu.memory_space<vmem>>, vector<256x160xbf16>
    %cst = arith.constant dense<0.000000e+00> : vector<64x160xf32>
    %14 = tpu.matmul %12, %13, %cst {dimension_numbers = #tpu.dot_dimension_numbers<[1], [0], [0], [1], [0, 0, 1, 1], [], []>} : vector<64x256xbf16>, vector<256x160xbf16>, vector<64x160xf32> -> vector<64x160xf32>
    %15 = arith.truncf %14 : vector<64x160xf32> to vector<64x160xbf16>
    %cst_12 = arith.constant dense<0.000000e+00> : vector<64x160xf32>
    %16 = tpu.matmul %15, %0, %cst_12 {dimension_numbers = #tpu.dot_dimension_numbers<[1], [0], [0], [1], [0, 0, 1, 1], [], []>} : vector<64x160xbf16>, vector<160x160xbf16>, vector<64x160xf32> -> vector<64x160xf32>
    %cst_13 = arith.constant 6.250000e-02 : f32
    %17 = vector.broadcast %cst_13 : f32 to vector<64x160xf32>
    %18 = arith.mulf %16, %17 : vector<64x160xf32>
    %19 = arith.subf %14, %18 : vector<64x160xf32>
    %20 = arith.mulf %19, %19 : vector<64x160xf32>
    %21 = arith.truncf %20 : vector<64x160xf32> to vector<64x160xbf16>
    %cst_14 = arith.constant dense<0.000000e+00> : vector<64x10xf32>
    %22 = tpu.matmul %21, %1, %cst_14 {dimension_numbers = #tpu.dot_dimension_numbers<[1], [0], [0], [1], [0, 0, 1, 1], [], []>} : vector<64x160xbf16>, vector<160x10xbf16>, vector<64x10xf32> -> vector<64x10xf32>
    %cst_15 = arith.constant 0.000000e+00 : f32
    %23 = vector.broadcast %cst_15 : f32 to vector<64x10xf32>
    %24 = math.exp %23 : vector<64x10xf32>
    %cst_16 = arith.constant dense<0.000000e+00> : vector<64xf32>
    %25 = vector.multi_reduction <add>, %24, %cst_16 [1] : vector<64x10xf32> to vector<64xf32>
    %26 = vector.shape_cast %25 : vector<64xf32> to vector<64x1xf32>
    %27 = tpu.reciprocal %26 {approx = true} : vector<64x1xf32> -> vector<64x1xf32>
    %28 = vector.broadcast %27 : vector<64x1xf32> to vector<64x10xf32>
    %29 = arith.mulf %24, %28 : vector<64x10xf32>
    %30 = arith.truncf %29 : vector<64x10xf32> to vector<64x10xbf16>
    %cst_17 = arith.constant dense<0.000000e+00> : vector<64x160xf32>
    %31 = tpu.matmul %30, %2, %cst_17 {dimension_numbers = #tpu.dot_dimension_numbers<[1], [0], [0], [1], [0, 0, 1, 1], [], []>} : vector<64x10xbf16>, vector<10x160xbf16>, vector<64x160xf32> -> vector<64x160xf32>
    %32 = arith.mulf %31, %14 : vector<64x160xf32>
    %33 = vector.shape_cast %32 : vector<64x160xf32> to vector<2x32x160xf32>
    %cst_18 = arith.constant dense<0.000000e+00> : vector<2x160xf32>
    %34 = vector.multi_reduction <add>, %33, %cst_18 [1] : vector<2x32x160xf32> to vector<2x160xf32>
    %35 = arith.mulf %34, %34 : vector<2x160xf32>
    %36 = arith.truncf %35 : vector<2x160xf32> to vector<2x160xbf16>
    %cst_19 = arith.constant dense<0.000000e+00> : vector<2x160xf32>
    %37 = tpu.matmul %36, %0, %cst_19 {dimension_numbers = #tpu.dot_dimension_numbers<[1], [0], [0], [1], [0, 0, 1, 1], [], []>} : vector<2x160xbf16>, vector<160x160xbf16>, vector<2x160xf32> -> vector<2x160xf32>
    %cst_20 = arith.constant 1.000000e+00 : f32
    %38 = vector.broadcast %cst_20 : f32 to vector<2x160xf32>
    %39 = arith.addf %38, %37 : vector<2x160xf32>
    %40 = tpu.reciprocal %39 {approx = true} : vector<2x160xf32> -> vector<2x160xf32>
    %41 = math.sqrt %37 : vector<2x160xf32>
    %42 = arith.mulf %34, %41 : vector<2x160xf32>
    %43 = arith.mulf %42, %40 : vector<2x160xf32>
    %44 = arith.truncf %43 : vector<2x160xf32> to vector<2x160xbf16>
    %cst_21 = arith.constant dense<0.000000e+00> : vector<2x160xf32>
    %45 = tpu.matmul %44, %0, %cst_21 {dimension_numbers = #tpu.dot_dimension_numbers<[1], [0], [0], [1], [0, 0, 1, 1], [], []>} : vector<2x160xbf16>, vector<160x160xbf16>, vector<2x160xf32> -> vector<2x160xf32>
    %cst_22 = arith.constant 6.250000e-02 : f32
    %46 = vector.broadcast %cst_22 : f32 to vector<2x160xf32>
    %47 = arith.mulf %45, %46 : vector<2x160xf32>
    %48 = arith.subf %43, %47 : vector<2x160xf32>
    %49 = arith.mulf %48, %48 : vector<2x160xf32>
    %50 = arith.truncf %49 : vector<2x160xf32> to vector<2x160xbf16>
    %cst_23 = arith.constant dense<0.000000e+00> : vector<2x10xf32>
    %51 = tpu.matmul %50, %1, %cst_23 {dimension_numbers = #tpu.dot_dimension_numbers<[1], [0], [0], [1], [0, 0, 1, 1], [], []>} : vector<2x160xbf16>, vector<160x10xbf16>, vector<2x10xf32> -> vector<2x10xf32>
    %52 = vector.shape_cast %48 : vector<2x160xf32> to vector<2x1x160xf32>
    %53 = vector.shape_cast %52 : vector<2x1x160xf32> to vector<2x1x160xf32>
    %54 = vector.broadcast %53 : vector<2x1x160xf32> to vector<2x32x160xf32>
    %55 = vector.shape_cast %54 : vector<2x32x160xf32> to vector<64x160xf32>
    %56 = arith.mulf %19, %55 : vector<64x160xf32>
    %57 = arith.truncf %56 : vector<64x160xf32> to vector<64x160xbf16>
    %cst_24 = arith.constant dense<0.000000e+00> : vector<64x10xf32>
    %58 = tpu.matmul %57, %1, %cst_24 {dimension_numbers = #tpu.dot_dimension_numbers<[1], [0], [0], [1], [0, 0, 1, 1], [], []>} : vector<64x160xbf16>, vector<160x10xbf16>, vector<64x10xf32> -> vector<64x10xf32>
    %59 = vector.shape_cast %51 : vector<2x10xf32> to vector<2x1x10xf32>
    %60 = vector.shape_cast %59 : vector<2x1x10xf32> to vector<2x1x10xf32>
    %61 = vector.broadcast %60 : vector<2x1x10xf32> to vector<2x32x10xf32>
    %62 = vector.shape_cast %61 : vector<2x32x10xf32> to vector<64x10xf32>
    %63 = arith.mulf %22, %62 : vector<64x10xf32>
    %cst_25 = arith.constant 1.000000e-30 : f32
    %64 = vector.broadcast %cst_25 : f32 to vector<64x10xf32>
    %65 = arith.addf %63, %64 : vector<64x10xf32>
    %66 = math.rsqrt %65 : vector<64x10xf32>
    %67 = arith.mulf %58, %66 : vector<64x10xf32>
    %68 = arith.addf %23, %67 : vector<64x10xf32>
    %69 = math.exp %68 : vector<64x10xf32>
    %cst_26 = arith.constant dense<0.000000e+00> : vector<64xf32>
    %70 = vector.multi_reduction <add>, %69, %cst_26 [1] : vector<64x10xf32> to vector<64xf32>
    %71 = vector.shape_cast %70 : vector<64xf32> to vector<64x1xf32>
    %72 = tpu.reciprocal %71 {approx = true} : vector<64x1xf32> -> vector<64x1xf32>
    %73 = vector.broadcast %72 : vector<64x1xf32> to vector<64x10xf32>
    %74 = arith.mulf %69, %73 : vector<64x10xf32>
    %75 = arith.truncf %74 : vector<64x10xf32> to vector<64x10xbf16>
    %cst_27 = arith.constant dense<0.000000e+00> : vector<64x160xf32>
    %76 = tpu.matmul %75, %2, %cst_27 {dimension_numbers = #tpu.dot_dimension_numbers<[1], [0], [0], [1], [0, 0, 1, 1], [], []>} : vector<64x10xbf16>, vector<10x160xbf16>, vector<64x160xf32> -> vector<64x160xf32>
    %77 = arith.mulf %76, %14 : vector<64x160xf32>
    %78 = vector.shape_cast %77 : vector<64x160xf32> to vector<2x32x160xf32>
    %cst_28 = arith.constant dense<0.000000e+00> : vector<2x160xf32>
    %79 = vector.multi_reduction <add>, %78, %cst_28 [1] : vector<2x32x160xf32> to vector<2x160xf32>
    %80 = arith.mulf %79, %79 : vector<2x160xf32>
    %81 = arith.truncf %80 : vector<2x160xf32> to vector<2x160xbf16>
    %cst_29 = arith.constant dense<0.000000e+00> : vector<2x160xf32>
    %82 = tpu.matmul %81, %0, %cst_29 {dimension_numbers = #tpu.dot_dimension_numbers<[1], [0], [0], [1], [0, 0, 1, 1], [], []>} : vector<2x160xbf16>, vector<160x160xbf16>, vector<2x160xf32> -> vector<2x160xf32>
    %cst_30 = arith.constant 1.000000e+00 : f32
    %83 = vector.broadcast %cst_30 : f32 to vector<2x160xf32>
    %84 = arith.addf %83, %82 : vector<2x160xf32>
    %85 = tpu.reciprocal %84 {approx = true} : vector<2x160xf32> -> vector<2x160xf32>
    %86 = math.sqrt %82 : vector<2x160xf32>
    %87 = arith.mulf %79, %86 : vector<2x160xf32>
    %88 = arith.mulf %87, %85 : vector<2x160xf32>
    %89 = arith.truncf %80 : vector<2x160xf32> to vector<2x160xbf16>
    %cst_31 = arith.constant dense<0.000000e+00> : vector<2x10xf32>
    %90 = tpu.matmul %89, %1, %cst_31 {dimension_numbers = #tpu.dot_dimension_numbers<[1], [0], [0], [1], [0, 0, 1, 1], [], []>} : vector<2x160xbf16>, vector<160x10xbf16>, vector<2x10xf32> -> vector<2x10xf32>
    %cst_32 = arith.constant 1.000000e+00 : f32
    %91 = vector.broadcast %cst_32 : f32 to vector<2x10xf32>
    %92 = arith.addf %91, %90 : vector<2x10xf32>
    %93 = tpu.reciprocal %92 {approx = true} : vector<2x10xf32> -> vector<2x10xf32>
    %94 = arith.mulf %90, %93 : vector<2x10xf32>
    %95 = arith.truncf %88 : vector<2x160xf32> to vector<2x160xbf16>
    %cst_33 = arith.constant dense<0.000000e+00> : vector<2x160xf32>
    %96 = tpu.matmul %95, %0, %cst_33 {dimension_numbers = #tpu.dot_dimension_numbers<[1], [0], [0], [1], [0, 0, 1, 1], [], []>} : vector<2x160xbf16>, vector<160x160xbf16>, vector<2x160xf32> -> vector<2x160xf32>
    %cst_34 = arith.constant 6.250000e-02 : f32
    %97 = vector.broadcast %cst_34 : f32 to vector<2x160xf32>
    %98 = arith.mulf %96, %97 : vector<2x160xf32>
    %99 = arith.subf %88, %98 : vector<2x160xf32>
    %100 = arith.mulf %99, %99 : vector<2x160xf32>
    %101 = arith.truncf %100 : vector<2x160xf32> to vector<2x160xbf16>
    %cst_35 = arith.constant dense<0.000000e+00> : vector<2x10xf32>
    %102 = tpu.matmul %101, %1, %cst_35 {dimension_numbers = #tpu.dot_dimension_numbers<[1], [0], [0], [1], [0, 0, 1, 1], [], []>} : vector<2x160xbf16>, vector<160x10xbf16>, vector<2x10xf32> -> vector<2x10xf32>
    %103 = vector.shape_cast %99 : vector<2x160xf32> to vector<2x1x160xf32>
    %104 = vector.shape_cast %103 : vector<2x1x160xf32> to vector<2x1x160xf32>
    %105 = vector.broadcast %104 : vector<2x1x160xf32> to vector<2x32x160xf32>
    %106 = vector.shape_cast %105 : vector<2x32x160xf32> to vector<64x160xf32>
    %107 = arith.mulf %19, %106 : vector<64x160xf32>
    %108 = arith.truncf %107 : vector<64x160xf32> to vector<64x160xbf16>
    %cst_36 = arith.constant dense<0.000000e+00> : vector<64x10xf32>
    %109 = tpu.matmul %108, %1, %cst_36 {dimension_numbers = #tpu.dot_dimension_numbers<[1], [0], [0], [1], [0, 0, 1, 1], [], []>} : vector<64x160xbf16>, vector<160x10xbf16>, vector<64x10xf32> -> vector<64x10xf32>
    %110 = vector.shape_cast %102 : vector<2x10xf32> to vector<2x1x10xf32>
    %111 = vector.shape_cast %110 : vector<2x1x10xf32> to vector<2x1x10xf32>
    %112 = vector.broadcast %111 : vector<2x1x10xf32> to vector<2x32x10xf32>
    %113 = vector.shape_cast %112 : vector<2x32x10xf32> to vector<64x10xf32>
    %114 = arith.mulf %22, %113 : vector<64x10xf32>
    %cst_37 = arith.constant 1.000000e-30 : f32
    %115 = vector.broadcast %cst_37 : f32 to vector<64x10xf32>
    %116 = arith.addf %114, %115 : vector<64x10xf32>
    %117 = math.rsqrt %116 : vector<64x10xf32>
    %118 = arith.mulf %109, %117 : vector<64x10xf32>
    %119 = arith.addf %68, %118 : vector<64x10xf32>
    %120 = math.exp %119 : vector<64x10xf32>
    %cst_38 = arith.constant dense<0.000000e+00> : vector<64xf32>
    %121 = vector.multi_reduction <add>, %120, %cst_38 [1] : vector<64x10xf32> to vector<64xf32>
    %122 = vector.shape_cast %121 : vector<64xf32> to vector<64x1xf32>
    %123 = tpu.reciprocal %122 {approx = true} : vector<64x1xf32> -> vector<64x1xf32>
    %124 = vector.broadcast %123 : vector<64x1xf32> to vector<64x10xf32>
    %125 = arith.mulf %120, %124 : vector<64x10xf32>
    %126 = vector.shape_cast %94 : vector<2x10xf32> to vector<2x1x10xf32>
    %127 = vector.shape_cast %126 : vector<2x1x10xf32> to vector<2x1x10xf32>
    %128 = vector.broadcast %127 : vector<2x1x10xf32> to vector<2x32x10xf32>
    %129 = vector.shape_cast %128 : vector<2x32x10xf32> to vector<64x10xf32>
    %130 = arith.mulf %125, %129 : vector<64x10xf32>
    %131 = arith.truncf %130 : vector<64x10xf32> to vector<64x10xbf16>
    %cst_39 = arith.constant dense<0.000000e+00> : vector<64x160xf32>
    %132 = tpu.matmul %131, %2, %cst_39 {dimension_numbers = #tpu.dot_dimension_numbers<[1], [0], [0], [1], [0, 0, 1, 1], [], []>} : vector<64x10xbf16>, vector<10x160xbf16>, vector<64x160xf32> -> vector<64x160xf32>
    %133 = arith.mulf %132, %14 : vector<64x160xf32>
    %134 = vector.shape_cast %133 : vector<64x160xf32> to vector<2x32x160xf32>
    %cst_40 = arith.constant dense<0.000000e+00> : vector<2x160xf32>
    %135 = vector.multi_reduction <add>, %134, %cst_40 [1] : vector<2x32x160xf32> to vector<2x160xf32>
    %136 = arith.mulf %135, %135 : vector<2x160xf32>
    %137 = arith.truncf %136 : vector<2x160xf32> to vector<2x160xbf16>
    %cst_41 = arith.constant dense<0.000000e+00> : vector<2x160xf32>
    %138 = tpu.matmul %137, %0, %cst_41 {dimension_numbers = #tpu.dot_dimension_numbers<[1], [0], [0], [1], [0, 0, 1, 1], [], []>} : vector<2x160xbf16>, vector<160x160xbf16>, vector<2x160xf32> -> vector<2x160xf32>
    %cst_42 = arith.constant 1.000000e+00 : f32
    %139 = vector.broadcast %cst_42 : f32 to vector<2x160xf32>
    %140 = arith.addf %139, %138 : vector<2x160xf32>
    %141 = tpu.reciprocal %140 {approx = true} : vector<2x160xf32> -> vector<2x160xf32>
    %142 = math.sqrt %138 : vector<2x160xf32>
    %143 = arith.mulf %135, %142 : vector<2x160xf32>
    %144 = arith.mulf %143, %141 : vector<2x160xf32>
    %c0_43 = arith.constant 0 : index
    %c0_44 = arith.constant 0 : index
    %145 = vector.load %arg7[%c0_43, %c0_44] : memref<2x160xf32, #tpu.memory_space<vmem>>, vector<2x160xf32>
    tpu.vector_store %arg7[%c0_43, %c0_44], %144 {strides = array<i32>} : memref<2x160xf32, #tpu.memory_space<vmem>>, vector<2x160xf32>,
    %c0_45 = arith.constant 0 : index
    %c0_46 = arith.constant 0 : index
    %146 = vector.load %arg8[%c0_45, %c0_46] : memref<2x160xf32, #tpu.memory_space<vmem>>, vector<2x160xf32>
    tpu.vector_store %arg8[%c0_45, %c0_46], %43 {strides = array<i32>} : memref<2x160xf32, #tpu.memory_space<vmem>>, vector<2x160xf32>,
    %c0_47 = arith.constant 0 : index
    %c0_48 = arith.constant 0 : index
    %147 = vector.load %arg9[%c0_47, %c0_48] : memref<2x160xf32, #tpu.memory_space<vmem>>, vector<2x160xf32>
    tpu.vector_store %arg9[%c0_47, %c0_48], %88 {strides = array<i32>} : memref<2x160xf32, #tpu.memory_space<vmem>>, vector<2x160xf32>,
    return
  }
  func.func @transform_0(%arg0: i32) -> (i32, i32, i32) {
    %c0_i32 = arith.constant 0 : i32
    %c0_i32_0 = arith.constant 0 : i32
    %c0_i32_1 = arith.constant 0 : i32
    return %arg0, %c0_i32, %c0_i32_0 : i32, i32, i32
  }
  func.func @transform_1(%arg0: i32) -> (i32, i32) {
    %c0_i32 = arith.constant 0 : i32
    %c0_i32_0 = arith.constant 0 : i32
    %c0_i32_1 = arith.constant 0 : i32
    return %c0_i32, %c0_i32_0 : i32, i32
  }
  func.func @transform_2(%arg0: i32) -> (i32, i32) {
    %c0_i32 = arith.constant 0 : i32
    %c0_i32_0 = arith.constant 0 : i32
    %c0_i32_1 = arith.constant 0 : i32
    return %c0_i32, %c0_i32_0 : i32, i32
  }
  func.func @transform_3(%arg0: i32) -> (i32, i32) {
    %c0_i32 = arith.constant 0 : i32
    %c0_i32_0 = arith.constant 0 : i32
    %c0_i32_1 = arith.constant 0 : i32
    return %c0_i32, %c0_i32_0 : i32, i32
  }
  func.func @transform_4(%arg0: i32) -> (i32, i32) {
    %c0_i32 = arith.constant 0 : i32
    %c0_i32_0 = arith.constant 0 : i32
    %c0_i32_1 = arith.constant 0 : i32
    return %c0_i32, %c0_i32_0 : i32, i32
  }
  func.func @transform_5(%arg0: i32) -> (i32, i32) {
    %c0_i32 = arith.constant 0 : i32
    %c0_i32_0 = arith.constant 0 : i32
    %c0_i32_1 = arith.constant 0 : i32
    return %c0_i32, %c0_i32_0 : i32, i32
  }
  func.func @transform_6(%arg0: i32) -> (i32, i32) {
    %c0_i32 = arith.constant 0 : i32
    %c0_i32_0 = arith.constant 0 : i32
    return %arg0, %c0_i32 : i32, i32
  }
  func.func @transform_7(%arg0: i32) -> (i32, i32) {
    %c0_i32 = arith.constant 0 : i32
    %c0_i32_0 = arith.constant 0 : i32
    return %arg0, %c0_i32 : i32, i32
  }
  func.func @transform_8(%arg0: i32) -> (i32, i32) {
    %c0_i32 = arith.constant 0 : i32
    %c0_i32_0 = arith.constant 0 : i32
    return %arg0, %c0_i32 : i32, i32
  }
}

</mosaic_0001>

<llo_original>
// kernel: tpu_custom_call.1
$region0: #{tpu_custom_call.1}
  #allocation0 [shape = 'u32[]', space=smem, size = 0x4, offset = 0x4, fixed_abs, tag = 'smem constant byte address 0x4 - core index']
  #allocation1 [shape = 'u32[144,128]{1,0:T(1,128)}', space=vmem, size = 0x12000, scoped, tag = 'internal scratch']
  %s0 = inlined_call_operand.vmem [shape: f32[2,32,8], index: 0, kind: input, shape index: {}]
  %s1 = inlined_call_operand.vmem [shape: bf16[256,160], index: 1, kind: input, shape index: {}]
  %s2 = inlined_call_operand.vmem [shape: bf16[32,256], index: 2, kind: input, shape index: {}]
  %s3 = inlined_call_operand.vmem [shape: bf16[160,160], index: 3, kind: input, shape index: {}]
  %s4 = inlined_call_operand.vmem [shape: bf16[160,10], index: 4, kind: input, shape index: {}]
  %s5 = inlined_call_operand.vmem [shape: bf16[10,160], index: 5, kind: input, shape index: {}]
  %s6 = inlined_call_operand.hbm [shape: f32[2,160], index: 6, kind: output, shape index: {0}]
  %s7 = inlined_call_operand.hbm [shape: f32[2,160], index: 7, kind: output, shape index: {1}]
  %s8 = inlined_call_operand.hbm [shape: f32[2,160], index: 8, kind: output, shape index: {2}]
  %9 = xla_tuple %s6, %s7, %s8
  %s10 = sld [smem:[#allocation0]]
  $region50: #{tpu_custom_call.1} parent=0
    _
  %s12 = ssub.s32 1, %s10
  %s13 = scalar_select 0, %s12, %s10
  $region1: #{tpu_custom_call.1} parent=0
    #allocation2 [shape = 'u8[2048]{0}', space=vmem, size = 0x800, scoped, tag = 'output window, operand 0, single buffered']
    #allocation3 [shape = 's32[1]{0}', space=sflag, size = 0x4, scoped, tag = 'scoped memory for tpu_custom_call.1']
    #allocation4 [shape = 'u8[2048]{0}', space=vmem, size = 0x800, scoped, tag = 'output window, operand 1, single buffered']
    #allocation5 [shape = 's32[1]{0}', space=sflag, size = 0x4, scoped, tag = 'scoped memory for tpu_custom_call.1']
    #allocation6 [shape = 'u8[2048]{0}', space=vmem, size = 0x800, scoped, tag = 'output window, operand 2, single buffered']
    %14 = vsyncpa [#allocation3], 0
    %15 = vsyncpa [#allocation5], 0
    // Predicated region
    $region2: #{tpu_custom_call.1} parent=1 // pred_check
      _
    $region3: #{tpu_custom_call.1} parent=1 // pred_check_branch
      %17 = sbr.rel (0) target = $region5
    $region4: #{tpu_custom_call.1} parent=1 // pred_region
      _
    $region5: #{tpu_custom_call.1} parent=1 // pred_fallthru
      _
    // Predicated region
    $region6: #{tpu_custom_call.1} parent=1 // pred_check
      _
    $region7: #{tpu_custom_call.1} parent=1 // pred_check_branch
      %19 = sbr.rel (0) target = $region9
    $region8: #{tpu_custom_call.1} parent=1 // pred_region
      _
    $region9: #{tpu_custom_call.1} parent=1 // pred_fallthru
      _
    // Predicated region
    $region10: #{tpu_custom_call.1} parent=1 // pred_check
      _
    $region11: #{tpu_custom_call.1} parent=1 // pred_check_branch
      %21 = sbr.rel (0) target = $region13
    $region12: #{tpu_custom_call.1} parent=1 // pred_region
      _
    $region13: #{tpu_custom_call.1} parent=1 // pred_fallthru
      _
    // Predicated region
    $region14: #{tpu_custom_call.1} parent=1 // pred_check
      _
    $region15: #{tpu_custom_call.1} parent=1 // pred_check_branch
      %23 = sbr.rel (0) target = $region17
    $region16: #{tpu_custom_call.1} parent=1 // pred_region
      _
    $region17: #{tpu_custom_call.1} parent=1 // pred_fallthru
      _
    // Predicated region
    $region18: #{tpu_custom_call.1} parent=1 // pred_check
      _
    $region19: #{tpu_custom_call.1} parent=1 // pred_check_branch
      %25 = sbr.rel (0) target = $region21
    $region20: #{tpu_custom_call.1} parent=1 // pred_region
      _
    $region21: #{tpu_custom_call.1} parent=1 // pred_fallthru
      _
    // Predicated region
    $region22: #{tpu_custom_call.1} parent=1 // pred_check
      _
    $region23: #{tpu_custom_call.1} parent=1 // pred_check_branch
      %27 = sbr.rel (0) target = $region25
    $region24: #{tpu_custom_call.1} parent=1 // pred_region
      _
    $region25: #{tpu_custom_call.1} parent=1 // pred_fallthru
      _
    %v29 = vld [vmem:[%s3] sm:$0xff]
    %v30 = vld [vmem:[%s3 + $0x8] sm:$0xff]
    %v31 = vld [vmem:[%s3 + $0x10] sm:$0xff]
    %v32 = vld [vmem:[%s3 + $0x18] sm:$0xff]
    %v33 = vld [vmem:[%s3 + $0x20] sm:$0xff]
    %v34 = vld [vmem:[%s3 + $0x28] sm:$0xff]
    %v35 = vld [vmem:[%s3 + $0x30] sm:$0xff]
    %v36 = vld [vmem:[%s3 + $0x38] sm:$0xff]
    %v37 = vld [vmem:[%s3 + $0x40] sm:$0xff]
    %v38 = vld [vmem:[%s3 + $0x48] sm:$0xff]
    %v39 = vld [vmem:[%s3 + $0x50] sm:$0xff]
    %v40 = vld [vmem:[%s3 + $0x58] sm:$0xff]
    %v41 = vld [vmem:[%s3 + $0x60] sm:$0xff]
    %v42 = vld [vmem:[%s3 + $0x68] sm:$0xff]
    %v43 = vld [vmem:[%s3 + $0x70] sm:$0xff]
    %v44 = vld [vmem:[%s3 + $0x78] sm:$0xff]
    %v45 = vld [vmem:[%s3 + $0x80] sm:$0xff]
    %v46 = vld [vmem:[%s3 + $0x88] sm:$0xff]
    %v47 = vld [vmem:[%s3 + $0x90] sm:$0xff]
    %v48 = vld [vmem:[%s3 + $0x98] sm:$0xff]
    %v49 = vld [vmem:[%s4] sm:$0xf]
    %v50 = vld [vmem:[%s4 + $0x4] sm:$0xf]
    %v51 = vld [vmem:[%s4 + $0x8] sm:$0xf]
    %v52 = vld [vmem:[%s4 + $0xc] sm:$0xf]
    %v53 = vld [vmem:[%s4 + $0x10] sm:$0xf]
    %v54 = vld [vmem:[%s4 + $0x14] sm:$0xf]
    %v55 = vld [vmem:[%s4 + $0x18] sm:$0xf]
    %v56 = vld [vmem:[%s4 + $0x1c] sm:$0xf]
    %v57 = vld [vmem:[%s4 + $0x20] sm:$0xf]
    %v58 = vld [vmem:[%s4 + $0x24] sm:$0xf]
    %v59 = vld [vmem:[%s4 + $0x28] sm:$0xf]
    %v60 = vld [vmem:[%s4 + $0x2c] sm:$0xf]
    %v61 = vld [vmem:[%s4 + $0x30] sm:$0xf]
    %v62 = vld [vmem:[%s4 + $0x34] sm:$0xf]
    %v63 = vld [vmem:[%s4 + $0x38] sm:$0xf]
    %v64 = vld [vmem:[%s4 + $0x3c] sm:$0xf]
    %v65 = vld [vmem:[%s4 + $0x40] sm:$0xf]
    %v66 = vld [vmem:[%s4 + $0x44] sm:$0xf]
    %v67 = vld [vmem:[%s4 + $0x48] sm:$0xf]
    %v68 = vld [vmem:[%s4 + $0x4c] sm:$0xf]
    %v69 = vld [vmem:[%s5] sm:$0xff]
    %v70 = vld [vmem:[%s5 + $0x8] sm:$0x11]
    %v71 = vld [vmem:[%s0] sm:$0xff]
    %v72 = vld [vmem:[%s0 + $0x8] sm:$0xff]
    %v73 = vld [vmem:[%s0 + $0x10] sm:$0xff]
    %v74 = vld [vmem:[%s0 + $0x18] sm:$0xff]
    %v75 = vld [vmem:[%s0 + $0x20] sm:$0xff]
    %v76 = vld [vmem:[%s0 + $0x28] sm:$0xff]
    %v77 = vld [vmem:[%s0 + $0x30] sm:$0xff]
    %v78 = vld [vmem:[%s0 + $0x38] sm:$0xff]
    %v79 = vpack.c.bf16 %v72, %v71
    %v80 = vpack.c.bf16 %v74, %v73
    %v81 = vpack.c.bf16 %v76, %v75
    %v82 = vpack.c.bf16 %v78, %v77
    %87 = vrot.lane.b32.xlu0 %v79, 8
    %v88 = vpop.permute.xlu0 %87
    %89 = vrot.lane.b32.xlu0 %v80, 8
    %v90 = vpop.permute.xlu0 %89
    %91 = vrot.lane.b32.xlu0 %v81, 8
    %v92 = vpop.permute.xlu0 %91
    %93 = vrot.lane.b32.xlu0 %v82, 8
    %v94 = vpop.permute.xlu0 %93
    %95 = vrot.lane.b32.xlu0 %v79, 16
    %v96 = vpop.permute.xlu0 %95
    %97 = vrot.lane.b32.xlu0 %v80, 16
    %v98 = vpop.permute.xlu0 %97
    %99 = vrot.lane.b32.xlu0 %v81, 16
    %v100 = vpop.permute.xlu0 %99
    %101 = vrot.lane.b32.xlu0 %v82, 16
    %v102 = vpop.permute.xlu0 %101
    %103 = vrot.lane.b32.xlu0 %v79, 24
    %v104 = vpop.permute.xlu0 %103
    %105 = vrot.lane.b32.xlu0 %v80, 24
    %v106 = vpop.permute.xlu0 %105
    %107 = vrot.lane.b32.xlu0 %v81, 24
    %v108 = vpop.permute.xlu0 %107
    %109 = vrot.lane.b32.xlu0 %v82, 24
    %v110 = vpop.permute.xlu0 %109
    %111 = vrot.lane.b32.xlu0 %v79, 32
    %v112 = vpop.permute.xlu0 %111
    %113 = vrot.lane.b32.xlu0 %v80, 32
    %v114 = vpop.permute.xlu0 %113
    %115 = vrot.lane.b32.xlu0 %v81, 32
    %v116 = vpop.permute.xlu0 %115
    %117 = vrot.lane.b32.xlu0 %v82, 32
    %v118 = vpop.permute.xlu0 %117
    %119 = vrot.lane.b32.xlu0 %v79, 40
    %v120 = vpop.permute.xlu0 %119
    %121 = vrot.lane.b32.xlu0 %v80, 40
    %v122 = vpop.permute.xlu0 %121
    %123 = vrot.lane.b32.xlu0 %v81, 40
    %v124 = vpop.permute.xlu0 %123
    %125 = vrot.lane.b32.xlu0 %v82, 40
    %v126 = vpop.permute.xlu0 %125
    %127 = vrot.lane.b32.xlu0 %v79, 48
    %v128 = vpop.permute.xlu0 %127
    %129 = vrot.lane.b32.xlu0 %v80, 48
    %v130 = vpop.permute.xlu0 %129
    %131 = vrot.lane.b32.xlu0 %v81, 48
    %v132 = vpop.permute.xlu0 %131
    %133 = vrot.lane.b32.xlu0 %v82, 48
    %v134 = vpop.permute.xlu0 %133
    %135 = vrot.lane.b32.xlu0 %v79, 56
    %v136 = vpop.permute.xlu0 %135
    %137 = vrot.lane.b32.xlu0 %v80, 56
    %v138 = vpop.permute.xlu0 %137
    %139 = vrot.lane.b32.xlu0 %v81, 56
    %v140 = vpop.permute.xlu0 %139
    %141 = vrot.lane.b32.xlu0 %v82, 56
    %v142 = vpop.permute.xlu0 %141
    %143 = vrot.lane.b32.xlu0 %v79, 64
    %v144 = vpop.permute.xlu0 %143
    %145 = vrot.lane.b32.xlu0 %v80, 64
    %v146 = vpop.permute.xlu0 %145
    %147 = vrot.lane.b32.xlu0 %v81, 64
    %v148 = vpop.permute.xlu0 %147
    %149 = vrot.lane.b32.xlu0 %v82, 64
    %v150 = vpop.permute.xlu0 %149
    %151 = vrot.lane.b32.xlu0 %v79, 72
    %v152 = vpop.permute.xlu0 %151
    %153 = vrot.lane.b32.xlu0 %v80, 72
    %v154 = vpop.permute.xlu0 %153
    %155 = vrot.lane.b32.xlu0 %v81, 72
    %v156 = vpop.permute.xlu0 %155
    %157 = vrot.lane.b32.xlu0 %v82, 72
    %v158 = vpop.permute.xlu0 %157
    %159 = vrot.lane.b32.xlu0 %v79, 80
    %v160 = vpop.permute.xlu0 %159
    %161 = vrot.lane.b32.xlu0 %v80, 80
    %v162 = vpop.permute.xlu0 %161
    %163 = vrot.lane.b32.xlu0 %v81, 80
    %v164 = vpop.permute.xlu0 %163
    %165 = vrot.lane.b32.xlu0 %v82, 80
    %v166 = vpop.permute.xlu0 %165
    %167 = vrot.lane.b32.xlu0 %v79, 88
    %v168 = vpop.permute.xlu0 %167
    %169 = vrot.lane.b32.xlu0 %v80, 88
    %v170 = vpop.permute.xlu0 %169
    %171 = vrot.lane.b32.xlu0 %v81, 88
    %v172 = vpop.permute.xlu0 %171
    %173 = vrot.lane.b32.xlu0 %v82, 88
    %v174 = vpop.permute.xlu0 %173
    %175 = vrot.lane.b32.xlu0 %v79, 96
    %v176 = vpop.permute.xlu0 %175
    %177 = vrot.lane.b32.xlu0 %v80, 96
    %v178 = vpop.permute.xlu0 %177
    %179 = vrot.lane.b32.xlu0 %v81, 96
    %v180 = vpop.permute.xlu0 %179
    %181 = vrot.lane.b32.xlu0 %v82, 96
    %v182 = vpop.permute.xlu0 %181
    %183 = vrot.lane.b32.xlu0 %v79, 104
    %v184 = vpop.permute.xlu0 %183
    %185 = vrot.lane.b32.xlu0 %v80, 104
    %v186 = vpop.permute.xlu0 %185
    %187 = vrot.lane.b32.xlu0 %v81, 104
    %v188 = vpop.permute.xlu0 %187
    %189 = vrot.lane.b32.xlu0 %v82, 104
    %v190 = vpop.permute.xlu0 %189
    %191 = vrot.lane.b32.xlu0 %v79, 112
    %v192 = vpop.permute.xlu0 %191
    %193 = vrot.lane.b32.xlu0 %v80, 112
    %v194 = vpop.permute.xlu0 %193
    %195 = vrot.lane.b32.xlu0 %v81, 112
    %v196 = vpop.permute.xlu0 %195
    %197 = vrot.lane.b32.xlu0 %v82, 112
    %v198 = vpop.permute.xlu0 %197
    %199 = vrot.lane.b32.xlu0 %v79, 120
    %v200 = vpop.permute.xlu0 %199
    %201 = vrot.lane.b32.xlu0 %v80, 120
    %v202 = vpop.permute.xlu0 %201
    %203 = vrot.lane.b32.xlu0 %v81, 120
    %v204 = vpop.permute.xlu0 %203
    %205 = vrot.lane.b32.xlu0 %v82, 120
    %v206 = vpop.permute.xlu0 %205
    %vm207 = vcmask 64512
    %v210 = vsel %vm207, %v79, %v88
    %v213 = vsel %vm207, %v80, %v90
    %v216 = vsel %vm207, %v81, %v92
    %v219 = vsel %vm207, %v82, %v94
    %vm220 = vcmask 130048
    %v222 = vsel %vm220, %v210, %v96
    %v224 = vsel %vm220, %v213, %v98
    %v226 = vsel %vm220, %v216, %v100
    %v228 = vsel %vm220, %v219, %v102
    %vm229 = vcmask 195584
    %v231 = vsel %vm229, %v222, %v104
    %v233 = vsel %vm229, %v224, %v106
    %v235 = vsel %vm229, %v226, %v108
    %v237 = vsel %vm229, %v228, %v110
    %vm238 = vcmask 261120
    %v240 = vsel %vm238, %v231, %v112
    %v242 = vsel %vm238, %v233, %v114
    %v244 = vsel %vm238, %v235, %v116
    %v246 = vsel %vm238, %v237, %v118
    %vm247 = vcmask 326656
    %v249 = vsel %vm247, %v240, %v120
    %v251 = vsel %vm247, %v242, %v122
    %v253 = vsel %vm247, %v244, %v124
    %v255 = vsel %vm247, %v246, %v126
    %vm256 = vcmask 392192
    %v258 = vsel %vm256, %v249, %v128
    %v260 = vsel %vm256, %v251, %v130
    %v262 = vsel %vm256, %v253, %v132
    %v264 = vsel %vm256, %v255, %v134
    %vm265 = vcmask 457728
    %v267 = vsel %vm265, %v258, %v136
    %v269 = vsel %vm265, %v260, %v138
    %v271 = vsel %vm265, %v262, %v140
    %v273 = vsel %vm265, %v264, %v142
    %vm274 = vcmask 523264
    %v276 = vsel %vm274, %v267, %v144
    %v278 = vsel %vm274, %v269, %v146
    %v280 = vsel %vm274, %v271, %v148
    %v282 = vsel %vm274, %v273, %v150
    %vm283 = vcmask 588800
    %v285 = vsel %vm283, %v276, %v152
    %v287 = vsel %vm283, %v278, %v154
    %v289 = vsel %vm283, %v280, %v156
    %v291 = vsel %vm283, %v282, %v158
    %vm292 = vcmask 654336
    %v294 = vsel %vm292, %v285, %v160
    %v296 = vsel %vm292, %v287, %v162
    %v298 = vsel %vm292, %v289, %v164
    %v300 = vsel %vm292, %v291, %v166
    %vm301 = vcmask 719872
    %v303 = vsel %vm301, %v294, %v168
    %v305 = vsel %vm301, %v296, %v170
    %v307 = vsel %vm301, %v298, %v172
    %v309 = vsel %vm301, %v300, %v174
    %vm310 = vcmask 785408
    %v312 = vsel %vm310, %v303, %v176
    %v314 = vsel %vm310, %v305, %v178
    %v316 = vsel %vm310, %v307, %v180
    %v318 = vsel %vm310, %v309, %v182
    %vm319 = vcmask 850944
    %v321 = vsel %vm319, %v312, %v184
    %v323 = vsel %vm319, %v314, %v186
    %v325 = vsel %vm319, %v316, %v188
    %v327 = vsel %vm319, %v318, %v190
    %vm328 = vcmask 916480
    %v330 = vsel %vm328, %v321, %v192
    %v332 = vsel %vm328, %v323, %v194
    %v334 = vsel %vm328, %v325, %v196
    %v336 = vsel %vm328, %v327, %v198
    %vm337 = vcmask 982016
    %v339 = vsel %vm337, %v330, %v200
    %v342 = vsel %vm337, %v332, %v202
    %v345 = vsel %vm337, %v334, %v204
    %v348 = vsel %vm337, %v336, %v206
    %v350 = vld [vmem:[%s2] sm:$0xff]
    %v351 = vld [vmem:[%s2 + $0x8] sm:$0xff]
    %v352 = vld [vmem:[%s2 + $0x10] sm:$0xff]
    %v353 = vld [vmem:[%s2 + $0x18] sm:$0xff]
    %v358 = vunpack.c.l.b16 %v350
    %v359 = vunpack.c.h.b16 %v350
    %v360 = vunpack.c.l.b16 %v351
    %v361 = vunpack.c.h.b16 %v351
    %v362 = vunpack.c.l.b16 %v352
    %v363 = vunpack.c.h.b16 %v352
    %v364 = vunpack.c.l.b16 %v353
    %v365 = vunpack.c.h.b16 %v353
    %v366 = vpack.c.b16 %v360, %v358
    %v367 = vpack.c.b16 %v361, %v359
    %v368 = vpack.c.b16 %v364, %v362
    %v369 = vpack.c.b16 %v365, %v363
    %v374 = vmul.bf16 %v339, %v366
    %v375 = vmul.bf16 %v339, %v367
    %v376 = vmul.bf16 %v342, %v368
    %v377 = vmul.bf16 %v342, %v369
    %v378 = vmul.bf16 %v345, %v366
    %v379 = vmul.bf16 %v345, %v367
    %v380 = vmul.bf16 %v348, %v368
    %v381 = vmul.bf16 %v348, %v369
    %v382 = vld [vmem:[%s1] sm:$0xff]
    %v383 = vld [vmem:[%s1 + $0x8] sm:$0xff]
    %v384 = vld [vmem:[%s1 + $0x10] sm:$0xff]
    %v385 = vld [vmem:[%s1 + $0x18] sm:$0xff]
    %v386 = vld [vmem:[%s1 + $0x20] sm:$0xff]
    %v387 = vld [vmem:[%s1 + $0x28] sm:$0xff]
    %v388 = vld [vmem:[%s1 + $0x30] sm:$0xff]
    %v389 = vld [vmem:[%s1 + $0x38] sm:$0xff]
    %v390 = vld [vmem:[%s1 + $0x40] sm:$0xff]
    %v391 = vld [vmem:[%s1 + $0x48] sm:$0xff]
    %v392 = vld [vmem:[%s1 + $0x50] sm:$0xff]
    %v393 = vld [vmem:[%s1 + $0x58] sm:$0xff]
    %v394 = vld [vmem:[%s1 + $0x60] sm:$0xff]
    %v395 = vld [vmem:[%s1 + $0x68] sm:$0xff]
    %v396 = vld [vmem:[%s1 + $0x70] sm:$0xff]
    %v397 = vld [vmem:[%s1 + $0x78] sm:$0xff]
    %v398 = vld [vmem:[%s1 + $0x80] sm:$0xff]
    %v399 = vld [vmem:[%s1 + $0x88] sm:$0xff]
    %v400 = vld [vmem:[%s1 + $0x90] sm:$0xff]
    %v401 = vld [vmem:[%s1 + $0x98] sm:$0xff]
    %v402 = vld [vmem:[%s1 + $0xa0] sm:$0xff]
    %v403 = vld [vmem:[%s1 + $0xa8] sm:$0xff]
    %v404 = vld [vmem:[%s1 + $0xb0] sm:$0xff]
    %v405 = vld [vmem:[%s1 + $0xb8] sm:$0xff]
    %v406 = vld [vmem:[%s1 + $0xc0] sm:$0xff]
    %v407 = vld [vmem:[%s1 + $0xc8] sm:$0xff]
    %v408 = vld [vmem:[%s1 + $0xd0] sm:$0xff]
    %v409 = vld [vmem:[%s1 + $0xd8] sm:$0xff]
    %v410 = vld [vmem:[%s1 + $0xe0] sm:$0xff]
    %v411 = vld [vmem:[%s1 + $0xe8] sm:$0xff]
    %v412 = vld [vmem:[%s1 + $0xf0] sm:$0xff]
    %v413 = vld [vmem:[%s1 + $0xf8] sm:$0xff]
    %v446 = vunpack.c.l.b16 %v382
    %v447 = vunpack.c.h.b16 %v382
    %v448 = vunpack.c.l.b16 %v383
    %v449 = vunpack.c.h.b16 %v383
    %v450 = vunpack.c.l.b16 %v384
    %v451 = vunpack.c.h.b16 %v384
    %v452 = vunpack.c.l.b16 %v385
    %v453 = vunpack.c.h.b16 %v385
    %v454 = vunpack.c.l.b16 %v386
    %v455 = vunpack.c.h.b16 %v386
    %v456 = vunpack.c.l.b16 %v387
    %v457 = vunpack.c.h.b16 %v387
    %v458 = vunpack.c.l.b16 %v388
    %v459 = vunpack.c.h.b16 %v388
    %v460 = vunpack.c.l.b16 %v389
    %v461 = vunpack.c.h.b16 %v389
    %v462 = vunpack.c.l.b16 %v390
    %v463 = vunpack.c.h.b16 %v390
    %v464 = vunpack.c.l.b16 %v391
    %v465 = vunpack.c.h.b16 %v391
    %v466 = vunpack.c.l.b16 %v392
    %v467 = vunpack.c.h.b16 %v392
    %v468 = vunpack.c.l.b16 %v393
    %v469 = vunpack.c.h.b16 %v393
    %v470 = vunpack.c.l.b16 %v394
    %v471 = vunpack.c.h.b16 %v394
    %v472 = vunpack.c.l.b16 %v395
    %v473 = vunpack.c.h.b16 %v395
    %v474 = vunpack.c.l.b16 %v396
    %v475 = vunpack.c.h.b16 %v396
    %v476 = vunpack.c.l.b16 %v397
    %v477 = vunpack.c.h.b16 %v397
    %v478 = vunpack.c.l.b16 %v398
    %v479 = vunpack.c.h.b16 %v398
    %v480 = vunpack.c.l.b16 %v399
    %v481 = vunpack.c.h.b16 %v399
    %v482 = vunpack.c.l.b16 %v400
    %v483 = vunpack.c.h.b16 %v400
    %v484 = vunpack.c.l.b16 %v401
    %v485 = vunpack.c.h.b16 %v401
    %v486 = vunpack.c.l.b16 %v402
    %v487 = vunpack.c.h.b16 %v402
    %v488 = vunpack.c.l.b16 %v403
    %v489 = vunpack.c.h.b16 %v403
    %v490 = vunpack.c.l.b16 %v404
    %v491 = vunpack.c.h.b16 %v404
    %v492 = vunpack.c.l.b16 %v405
    %v493 = vunpack.c.h.b16 %v405
    %v494 = vunpack.c.l.b16 %v406
    %v495 = vunpack.c.h.b16 %v406
    %v496 = vunpack.c.l.b16 %v407
    %v497 = vunpack.c.h.b16 %v407
    %v498 = vunpack.c.l.b16 %v408
    %v499 = vunpack.c.h.b16 %v408
    %v500 = vunpack.c.l.b16 %v409
    %v501 = vunpack.c.h.b16 %v409
    %v502 = vunpack.c.l.b16 %v410
    %v503 = vunpack.c.h.b16 %v410
    %v504 = vunpack.c.l.b16 %v411
    %v505 = vunpack.c.h.b16 %v411
    %v506 = vunpack.c.l.b16 %v412
    %v507 = vunpack.c.h.b16 %v412
    %v508 = vunpack.c.l.b16 %v413
    %v509 = vunpack.c.h.b16 %v413
    %v510 = vpack.c.b16 %v448, %v446
    %v511 = vpack.c.b16 %v449, %v447
    %v512 = vpack.c.b16 %v452, %v450
    %v513 = vpack.c.b16 %v453, %v451
    %v514 = vpack.c.b16 %v456, %v454
    %v515 = vpack.c.b16 %v457, %v455
    %v516 = vpack.c.b16 %v460, %v458
    %v517 = vpack.c.b16 %v461, %v459
    %v518 = vpack.c.b16 %v464, %v462
    %v519 = vpack.c.b16 %v465, %v463
    %v520 = vpack.c.b16 %v468, %v466
    %v521 = vpack.c.b16 %v469, %v467
    %v522 = vpack.c.b16 %v472, %v470
    %v523 = vpack.c.b16 %v473, %v471
    %v524 = vpack.c.b16 %v476, %v474
    %v525 = vpack.c.b16 %v477, %v475
    %v526 = vpack.c.b16 %v480, %v478
    %v527 = vpack.c.b16 %v481, %v479
    %v528 = vpack.c.b16 %v484, %v482
    %v529 = vpack.c.b16 %v485, %v483
    %v530 = vpack.c.b16 %v488, %v486
    %v531 = vpack.c.b16 %v489, %v487
    %v532 = vpack.c.b16 %v492, %v490
    %v533 = vpack.c.b16 %v493, %v491
    %v534 = vpack.c.b16 %v496, %v494
    %v535 = vpack.c.b16 %v497, %v495
    %v536 = vpack.c.b16 %v500, %v498
    %v537 = vpack.c.b16 %v501, %v499
    %v538 = vpack.c.b16 %v504, %v502
    %v539 = vpack.c.b16 %v505, %v503
    %v540 = vpack.c.b16 %v508, %v506
    %v541 = vpack.c.b16 %v509, %v507
    %574 = vmatprep.subr.bf16.mxu0 %v511
    %575 = vmatpush1.bf16.msra.mxu0 %v510
    %576 = vmatprep.subr.bf16.mxu0 %v513
    %577 = vmatpush1.bf16.msra.mxu0 %v512
    %578 = vmatprep.subr.bf16.mxu0 %v515
    %579 = vmatpush1.bf16.msra.mxu0 %v514
    %580 = vmatprep.subr.bf16.mxu0 %v517
    %581 = vmatpush1.bf16.msra.mxu0 %v516
    %582 = vmatprep.subr.bf16.mxu0 %v519
    %583 = vmatpush1.bf16.msra.mxu0 %v518
    %584 = vmatprep.subr.bf16.mxu0 %v521
    %585 = vmatpush1.bf16.msra.mxu0 %v520
    %586 = vmatprep.subr.bf16.mxu0 %v523
    %587 = vmatpush1.bf16.msra.mxu0 %v522
    %588 = vmatprep.subr.bf16.mxu0 %v525
    %589 = vmatpush1.bf16.msra.mxu0 %v524
    %590 = vmatprep.subr.bf16.mxu0 %v527
    %591 = vmatpush1.bf16.msra.mxu0 %v526
    %592 = vmatprep.subr.bf16.mxu0 %v529
    %593 = vmatpush1.bf16.msra.mxu0 %v528
    %594 = vmatprep.subr.bf16.mxu0 %v531
    %595 = vmatpush1.bf16.msra.mxu0 %v530
    %596 = vmatprep.subr.bf16.mxu0 %v533
    %597 = vmatpush1.bf16.msra.mxu0 %v532
    %598 = vmatprep.subr.bf16.mxu0 %v535
    %599 = vmatpush1.bf16.msra.mxu0 %v534
    %600 = vmatprep.subr.bf16.mxu0 %v537
    %601 = vmatpush1.bf16.msra.mxu0 %v536
    %602 = vmatprep.subr.bf16.mxu0 %v539
    %603 = vmatpush1.bf16.msra.mxu0 %v538
    %604 = vmatprep.subr.bf16.mxu0 %v541
    %605 = vmatpush1.bf16.msra.mxu0 %v540
    %606 = vmatprep.mubr.bf16.mxu0 %v375
    %607 = vmatmul.mubr.bf16.gmra.mrb[0].mxu0 %v374
    %v608 = vpop.f32.mrb[0].mxu0
    %v609 = vadd.f32 0.0, %v608
    %v610 = vpop.f32.mrb[0].mxu0
    %v611 = vadd.f32 0.0, %v610
    %v612 = vpop.f32.mrb[0].mxu0
    %v613 = vadd.f32 0.0, %v612
    %v614 = vpop.f32.mrb[0].mxu0
    %v615 = vadd.f32 0.0, %v614
    %616 = vmatprep.mubr.bf16.mxu0 %v377
    %617 = vmatmul.mubr.bf16.gmra.mrb[0].mxu0 %v376
    %v618 = vpop.f32.mrb[0].mxu0
    %v619 = vadd.f32 0.0, %v618
    %v620 = vpop.f32.mrb[0].mxu0
    %v621 = vadd.f32 0.0, %v620
    %v622 = vpop.f32.mrb[0].mxu0
    %v623 = vadd.f32 0.0, %v622
    %v624 = vpop.f32.mrb[0].mxu0
    %v625 = vadd.f32 0.0, %v624
    %626 = vmatprep.mubr.bf16.mxu0 %v379
    %627 = vmatmul.mubr.bf16.gmra.mrb[0].mxu0 %v378
    %v628 = vpop.f32.mrb[0].mxu0
    %v629 = vadd.f32 0.0, %v628
    %v630 = vpop.f32.mrb[0].mxu0
    %v631 = vadd.f32 0.0, %v630
    %v632 = vpop.f32.mrb[0].mxu0
    %v633 = vadd.f32 0.0, %v632
    %v634 = vpop.f32.mrb[0].mxu0
    %v635 = vadd.f32 0.0, %v634
    %636 = vmatprep.mubr.bf16.mxu0 %v381
    %637 = vmatmul.mubr.bf16.gmra.mrb[0].mxu0 %v380
    %v638 = vpop.f32.mrb[0].mxu0
    %v639 = vadd.f32 0.0, %v638
    %v640 = vpop.f32.mrb[0].mxu0
    %v641 = vadd.f32 0.0, %v640
    %v642 = vpop.f32.mrb[0].mxu0
    %v643 = vadd.f32 0.0, %v642
    %v644 = vpop.f32.mrb[0].mxu0
    %v645 = vadd.f32 0.0, %v644
    %646 = vdwg.mxu0
    %v647 = vpack.c.bf16 %v613, %v609
    %v648 = vpack.c.bf16 %v615, %v611
    %v649 = vpack.c.bf16 %v623, %v619
    %v650 = vpack.c.bf16 %v625, %v621
    %v651 = vpack.c.bf16 %v633, %v629
    %v652 = vpack.c.bf16 %v635, %v631
    %v653 = vpack.c.bf16 %v643, %v639
    %v654 = vpack.c.bf16 %v645, %v641
    %v675 = vunpack.c.l.b16 %v29
    %v676 = vunpack.c.h.b16 %v29
    %v677 = vunpack.c.l.b16 %v30
    %v678 = vunpack.c.h.b16 %v30
    %v679 = vunpack.c.l.b16 %v31
    %v680 = vunpack.c.h.b16 %v31
    %v681 = vunpack.c.l.b16 %v32
    %v682 = vunpack.c.h.b16 %v32
    %v683 = vunpack.c.l.b16 %v33
    %v684 = vunpack.c.h.b16 %v33
    %v685 = vunpack.c.l.b16 %v34
    %v686 = vunpack.c.h.b16 %v34
    %v687 = vunpack.c.l.b16 %v35
    %v688 = vunpack.c.h.b16 %v35
    %v689 = vunpack.c.l.b16 %v36
    %v690 = vunpack.c.h.b16 %v36
    %v691 = vunpack.c.l.b16 %v37
    %v692 = vunpack.c.h.b16 %v37
    %v693 = vunpack.c.l.b16 %v38
    %v694 = vunpack.c.h.b16 %v38
    %v695 = vunpack.c.l.b16 %v39
    %v696 = vunpack.c.h.b16 %v39
    %v697 = vunpack.c.l.b16 %v40
    %v698 = vunpack.c.h.b16 %v40
    %v699 = vunpack.c.l.b16 %v41
    %v700 = vunpack.c.h.b16 %v41
    %v701 = vunpack.c.l.b16 %v42
    %v702 = vunpack.c.h.b16 %v42
    %v703 = vunpack.c.l.b16 %v43
    %v704 = vunpack.c.h.b16 %v43
    %v705 = vunpack.c.l.b16 %v44
    %v706 = vunpack.c.h.b16 %v44
    %v707 = vunpack.c.l.b16 %v45
    %v708 = vunpack.c.h.b16 %v45
    %v709 = vunpack.c.l.b16 %v46
    %v710 = vunpack.c.h.b16 %v46
    %v711 = vunpack.c.l.b16 %v47
    %v712 = vunpack.c.h.b16 %v47
    %v713 = vunpack.c.l.b16 %v48
    %v714 = vunpack.c.h.b16 %v48
    %v715 = vpack.c.b16 %v677, %v675
    %v716 = vpack.c.b16 %v678, %v676
    %v717 = vpack.c.b16 %v681, %v679
    %v718 = vpack.c.b16 %v682, %v680
    %v719 = vpack.c.b16 %v685, %v683
    %v720 = vpack.c.b16 %v686, %v684
    %v721 = vpack.c.b16 %v689, %v687
    %v722 = vpack.c.b16 %v690, %v688
    %v723 = vpack.c.b16 %v693, %v691
    %v724 = vpack.c.b16 %v694, %v692
    %v725 = vpack.c.b16 %v697, %v695
    %v726 = vpack.c.b16 %v698, %v696
    %v727 = vpack.c.b16 %v701, %v699
    %v728 = vpack.c.b16 %v702, %v700
    %v729 = vpack.c.b16 %v705, %v703
    %v730 = vpack.c.b16 %v706, %v704
    %v731 = vpack.c.b16 %v709, %v707
    %v732 = vpack.c.b16 %v710, %v708
    %v733 = vpack.c.b16 %v713, %v711
    %v734 = vpack.c.b16 %v714, %v712
    %v756 = vsel %vm238, %v648, 0
    %v759 = vsel %vm238, %v650, 0
    %v762 = vsel %vm238, %v652, 0
    %v765 = vsel %vm238, %v654, 0
    %767 = vmatprep.subr.bf16.mxu0 %v716
    %768 = vmatpush1.bf16.msra.mxu0 %v715
    %769 = vmatprep.subr.bf16.mxu0 %v718
    %770 = vmatpush1.bf16.msra.mxu0 %v717
    %771 = vmatprep.subr.bf16.mxu0 %v720
    %772 = vmatpush1.bf16.msra.mxu0 %v719
    %773 = vmatprep.subr.bf16.mxu0 %v722
    %774 = vmatpush1.bf16.msra.mxu0 %v721
    %775 = vmatprep.subr.bf16.mxu0 %v724
    %776 = vmatpush1.bf16.msra.mxu0 %v723
    %777 = vmatprep.subr.bf16.mxu0 %v726
    %778 = vmatpush1.bf16.msra.mxu0 %v725
    %779 = vmatprep.subr.bf16.mxu0 %v728
    %780 = vmatpush1.bf16.msra.mxu0 %v727
    %781 = vmatprep.subr.bf16.mxu0 %v730
    %782 = vmatpush1.bf16.msra.mxu0 %v729
    %783 = vmatprep.subr.bf16.mxu0 %v732
    %784 = vmatpush1.bf16.msra.mxu0 %v731
    %785 = vmatprep.subr.bf16.mxu0 %v734
    %786 = vmatpush1.bf16.msra.mxu0 %v733
    %787 = vmatprep.subr.bf16.mxu0 0
    %788 = vmatpush1.bf16.msra.mxu0 0
    %789 = vmatprep.subr.bf16.mxu0 0
    %790 = vmatpush1.bf16.msra.mxu0 0
    %791 = vmatprep.subr.bf16.mxu0 0
    %792 = vmatpush1.bf16.msra.mxu0 0
    %793 = vmatprep.subr.bf16.mxu0 0
    %794 = vmatpush1.bf16.msra.mxu0 0
    %795 = vmatprep.subr.bf16.mxu0 0
    %796 = vmatpush1.bf16.msra.mxu0 0
    %797 = vmatprep.subr.bf16.mxu0 0
    %798 = vmatpush1.bf16.msra.mxu0 0
    %799 = vmatprep.mubr.bf16.mxu0 %v756
    %800 = vmatmul.mubr.bf16.gmra.mrb[0].mxu0 %v647
    %v801 = vpop.f32.mrb[0].mxu0
    %v802 = vadd.f32 0.0, %v801
    %v803 = vpop.f32.mrb[0].mxu0
    %v804 = vadd.f32 0.0, %v803
    %v805 = vpop.f32.mrb[0].mxu0
    %v806 = vadd.f32 0.0, %v805
    %v807 = vpop.f32.mrb[0].mxu0
    %v808 = vadd.f32 0.0, %v807
    %809 = vmatprep.mubr.bf16.mxu0 %v759
    %810 = vmatmul.mubr.bf16.gmra.mrb[0].mxu0 %v649
    %v811 = vpop.f32.mrb[0].mxu0
    %v812 = vadd.f32 0.0, %v811
    %v813 = vpop.f32.mrb[0].mxu0
    %v814 = vadd.f32 0.0, %v813
    %v815 = vpop.f32.mrb[0].mxu0
    %v816 = vadd.f32 0.0, %v815
    %v817 = vpop.f32.mrb[0].mxu0
    %v818 = vadd.f32 0.0, %v817
    %819 = vmatprep.mubr.bf16.mxu0 %v762
    %820 = vmatmul.mubr.bf16.gmra.mrb[0].mxu0 %v651
    %v821 = vpop.f32.mrb[0].mxu0
    %v822 = vadd.f32 0.0, %v821
    %v823 = vpop.f32.mrb[0].mxu0
    %v824 = vadd.f32 0.0, %v823
    %v825 = vpop.f32.mrb[0].mxu0
    %v826 = vadd.f32 0.0, %v825
    %v827 = vpop.f32.mrb[0].mxu0
    %v828 = vadd.f32 0.0, %v827
    %829 = vmatprep.mubr.bf16.mxu0 %v765
    %830 = vmatmul.mubr.bf16.gmra.mrb[0].mxu0 %v653
    %v831 = vpop.f32.mrb[0].mxu0
    %v832 = vadd.f32 0.0, %v831
    %v833 = vpop.f32.mrb[0].mxu0
    %v834 = vadd.f32 0.0, %v833
    %v835 = vpop.f32.mrb[0].mxu0
    %v836 = vadd.f32 0.0, %v835
    %v837 = vpop.f32.mrb[0].mxu0
    %v838 = vadd.f32 0.0, %v837
    %839 = vdwg.mxu0
    %v840 = vmul.f32 %v802, 0.0625
    %v841 = vmul.f32 %v804, 0.0625
    %v842 = vmul.f32 %v806, 0.0625
    %v843 = vmul.f32 %v808, 0.0625
    %v844 = vmul.f32 %v812, 0.0625
    %v845 = vmul.f32 %v814, 0.0625
    %v846 = vmul.f32 %v816, 0.0625
    %v847 = vmul.f32 %v818, 0.0625
    %v848 = vmul.f32 %v822, 0.0625
    %v849 = vmul.f32 %v824, 0.0625
    %v850 = vmul.f32 %v826, 0.0625
    %v851 = vmul.f32 %v828, 0.0625
    %v852 = vmul.f32 %v832, 0.0625
    %v853 = vmul.f32 %v834, 0.0625
    %v854 = vmul.f32 %v836, 0.0625
    %v855 = vmul.f32 %v838, 0.0625
    %v856 = vsub.f32 %v609, %v840
    %v857 = vsub.f32 %v611, %v841
    %v858 = vsub.f32 %v613, %v842
    %v859 = vsub.f32 %v615, %v843
    %v860 = vsub.f32 %v619, %v844
    %v861 = vsub.f32 %v621, %v845
    %v862 = vsub.f32 %v623, %v846
    %v863 = vsub.f32 %v625, %v847
    %v864 = vsub.f32 %v629, %v848
    %v865 = vsub.f32 %v631, %v849
    %v866 = vsub.f32 %v633, %v850
    %v867 = vsub.f32 %v635, %v851
    %v868 = vsub.f32 %v639, %v852
    %v869 = vsub.f32 %v641, %v853
    %v870 = vsub.f32 %v643, %v854
    %v871 = vsub.f32 %v645, %v855
    %v872 = vmul.f32 %v856, %v856
    %v873 = vmul.f32 %v857, %v857
    %v874 = vmul.f32 %v858, %v858
    %v875 = vmul.f32 %v859, %v859
    %v876 = vmul.f32 %v860, %v860
    %v877 = vmul.f32 %v861, %v861
    %v878 = vmul.f32 %v862, %v862
    %v879 = vmul.f32 %v863, %v863
    %v880 = vmul.f32 %v864, %v864
    %v881 = vmul.f32 %v865, %v865
    %v882 = vmul.f32 %v866, %v866
    %v883 = vmul.f32 %v867, %v867
    %v884 = vmul.f32 %v868, %v868
    %v885 = vmul.f32 %v869, %v869
    %v886 = vmul.f32 %v870, %v870
    %v887 = vmul.f32 %v871, %v871
    %v888 = vpack.c.bf16 %v874, %v872
    %v889 = vpack.c.bf16 %v875, %v873
    %v890 = vpack.c.bf16 %v878, %v876
    %v891 = vpack.c.bf16 %v879, %v877
    %v892 = vpack.c.bf16 %v882, %v880
    %v893 = vpack.c.bf16 %v883, %v881
    %v894 = vpack.c.bf16 %v886, %v884
    %v895 = vpack.c.bf16 %v887, %v885
    %v916 = vunpack.c.l.b16 %v49
    %v917 = vunpack.c.l.b16 %v50
    %v918 = vunpack.c.l.b16 %v51
    %v919 = vunpack.c.l.b16 %v52
    %v920 = vunpack.c.l.b16 %v53
    %v921 = vunpack.c.l.b16 %v54
    %v922 = vunpack.c.l.b16 %v55
    %v923 = vunpack.c.l.b16 %v56
    %v924 = vunpack.c.l.b16 %v57
    %v925 = vunpack.c.l.b16 %v58
    %v926 = vunpack.c.l.b16 %v59
    %v927 = vunpack.c.l.b16 %v60
    %v928 = vunpack.c.l.b16 %v61
    %v929 = vunpack.c.l.b16 %v62
    %v930 = vunpack.c.l.b16 %v63
    %v931 = vunpack.c.l.b16 %v64
    %v932 = vunpack.c.l.b16 %v65
    %v933 = vunpack.c.l.b16 %v66
    %v934 = vunpack.c.l.b16 %v67
    %v935 = vunpack.c.l.b16 %v68
    %v936 = vpack.c.b16 %v917, %v916
    %v937 = vpack.c.b16 %v919, %v918
    %v938 = vpack.c.b16 %v921, %v920
    %v939 = vpack.c.b16 %v923, %v922
    %v940 = vpack.c.b16 %v925, %v924
    %v941 = vpack.c.b16 %v927, %v926
    %v942 = vpack.c.b16 %v929, %v928
    %v943 = vpack.c.b16 %v931, %v930
    %v944 = vpack.c.b16 %v933, %v932
    %v945 = vpack.c.b16 %v935, %v934
    %v957 = vsel %vm238, %v889, 0
    %v960 = vsel %vm238, %v891, 0
    %v963 = vsel %vm238, %v893, 0
    %v966 = vsel %vm238, %v895, 0
    %968 = vmatprep.subr.bf16.mxu0 0
    %969 = vmatpush1.bf16.msra.mxu0 %v936
    %970 = vmatprep.subr.bf16.mxu0 0
    %971 = vmatpush1.bf16.msra.mxu0 %v937
    %972 = vmatprep.subr.bf16.mxu0 0
    %973 = vmatpush1.bf16.msra.mxu0 %v938
    %974 = vmatprep.subr.bf16.mxu0 0
    %975 = vmatpush1.bf16.msra.mxu0 %v939
    %976 = vmatprep.subr.bf16.mxu0 0
    %977 = vmatpush1.bf16.msra.mxu0 %v940
    %978 = vmatprep.subr.bf16.mxu0 0
    %979 = vmatpush1.bf16.msra.mxu0 %v941
    %980 = vmatprep.subr.bf16.mxu0 0
    %981 = vmatpush1.bf16.msra.mxu0 %v942
    %982 = vmatprep.subr.bf16.mxu0 0
    %983 = vmatpush1.bf16.msra.mxu0 %v943
    %984 = vmatprep.subr.bf16.mxu0 0
    %985 = vmatpush1.bf16.msra.mxu0 %v944
    %986 = vmatprep.subr.bf16.mxu0 0
    %987 = vmatpush1.bf16.msra.mxu0 %v945
    %988 = vmatprep.subr.bf16.mxu0 0
    %989 = vmatpush1.bf16.msra.mxu0 0
    %990 = vmatprep.subr.bf16.mxu0 0
    %991 = vmatpush1.bf16.msra.mxu0 0
    %992 = vmatprep.subr.bf16.mxu0 0
    %993 = vmatpush1.bf16.msra.mxu0 0
    %994 = vmatprep.subr.bf16.mxu0 0
    %995 = vmatpush1.bf16.msra.mxu0 0
    %996 = vmatprep.subr.bf16.mxu0 0
    %997 = vmatpush1.bf16.msra.mxu0 0
    %998 = vmatprep.subr.bf16.mxu0 0
    %999 = vmatpush1.bf16.msra.mxu0 0
    %1000 = vmatprep.mubr.bf16.mxu0 %v957
    %1001 = vmatmul.mubr.bf16.gmra.mrb[0].mxu0 %v888
    %v1002 = vpop.f32.mrb[0].mxu0
    %v1003 = vadd.f32 0.0, %v1002
    %v1004 = vpop.f32.mrb[0].mxu0
    %v1005 = vpop.f32.mrb[0].mxu0
    %v1006 = vadd.f32 0.0, %v1005
    %v1007 = vpop.f32.mrb[0].mxu0
    %1008 = vmatprep.mubr.bf16.mxu0 %v960
    %1009 = vmatmul.mubr.bf16.gmra.mrb[0].mxu0 %v890
    %v1010 = vpop.f32.mrb[0].mxu0
    %v1011 = vadd.f32 0.0, %v1010
    %v1012 = vpop.f32.mrb[0].mxu0
    %v1013 = vpop.f32.mrb[0].mxu0
    %v1014 = vadd.f32 0.0, %v1013
    %v1015 = vpop.f32.mrb[0].mxu0
    %1016 = vmatprep.mubr.bf16.mxu0 %v963
    %1017 = vmatmul.mubr.bf16.gmra.mrb[0].mxu0 %v892
    %v1018 = vpop.f32.mrb[0].mxu0
    %v1019 = vadd.f32 0.0, %v1018
    %v1020 = vpop.f32.mrb[0].mxu0
    %v1021 = vpop.f32.mrb[0].mxu0
    %v1022 = vadd.f32 0.0, %v1021
    %v1023 = vpop.f32.mrb[0].mxu0
    %1024 = vmatprep.mubr.bf16.mxu0 %v966
    %1025 = vmatmul.mubr.bf16.gmra.mrb[0].mxu0 %v894
    %v1026 = vpop.f32.mrb[0].mxu0
    %v1027 = vadd.f32 0.0, %v1026
    %v1028 = vpop.f32.mrb[0].mxu0
    %v1029 = vpop.f32.mrb[0].mxu0
    %v1030 = vadd.f32 0.0, %v1029
    %v1031 = vpop.f32.mrb[0].mxu0
    %1032 = vdwg.mxu0
    %vm1033 = vcmask 80896
    %v1034 = vsel %vm1033, 1.0, 0.0
    %1035 = vadd.xlane.f32.xlu0 %v1034
    %v1036 = vpop.xlane.xlu0 %1035
    %v1037 = vrcp.pop %v1036
    %v1038 = vpack.c.bf16 %v1037, %v1037
    %v1041 = vunpack.c.l.b16 %v69
    %v1042 = vunpack.c.h.b16 %v69
    %v1043 = vunpack.c.l.b16 %v70
    %v1044 = vunpack.c.h.b16 %v70
    %v1045 = vpack.c.b16 %v1043, %v1041
    %v1046 = vpack.c.b16 %v1044, %v1042
    %v1048 = vsel %vm1033, %v1038, 0
    %vm1050 = vcmask 1044480
    %v1052 = vsel %vm1050, %v1045, 0
    %v1055 = vsel %vm1050, %v1046, 0
    %1057 = vmatprep.subr.bf16.mxu0 %v1055
    %1058 = vmatpush1.bf16.msra.mxu0 %v1052
    %1059 = vmatprep.subr.bf16.mxu0 0
    %1060 = vmatpush1.bf16.msra.mxu0 0
    %1061 = vmatprep.subr.bf16.mxu0 0
    %1062 = vmatpush1.bf16.msra.mxu0 0
    %1063 = vmatprep.subr.bf16.mxu0 0
    %1064 = vmatpush1.bf16.msra.mxu0 0
    %1065 = vmatprep.subr.bf16.mxu0 0
    %1066 = vmatpush1.bf16.msra.mxu0 0
    %1067 = vmatprep.subr.bf16.mxu0 0
    %1068 = vmatpush1.bf16.msra.mxu0 0
    %1069 = vmatprep.subr.bf16.mxu0 0
    %1070 = vmatpush1.bf16.msra.mxu0 0
    %1071 = vmatprep.subr.bf16.mxu0 0
    %1072 = vmatpush1.bf16.msra.mxu0 0
    %1073 = vmatprep.subr.bf16.mxu0 0
    %1074 = vmatpush1.bf16.msra.mxu0 0
    %1075 = vmatprep.subr.bf16.mxu0 0
    %1076 = vmatpush1.bf16.msra.mxu0 0
    %1077 = vmatprep.subr.bf16.mxu0 0
    %1078 = vmatpush1.bf16.msra.mxu0 0
    %1079 = vmatprep.subr.bf16.mxu0 0
    %1080 = vmatpush1.bf16.msra.mxu0 0
    %1081 = vmatprep.subr.bf16.mxu0 0
    %1082 = vmatpush1.bf16.msra.mxu0 0
    %1083 = vmatprep.subr.bf16.mxu0 0
    %1084 = vmatpush1.bf16.msra.mxu0 0
    %1085 = vmatprep.subr.bf16.mxu0 0
    %1086 = vmatpush1.bf16.msra.mxu0 0
    %1087 = vmatprep.subr.bf16.mxu0 0
    %1088 = vmatpush1.bf16.msra.mxu0 0
    %1089 = vmatprep.mubr.bf16.mxu0 0
    %1090 = vmatmul.mubr.bf16.gmra.mrb[0].mxu0 %v1048
    %v1091 = vpop.f32.mrb[0].mxu0
    %v1092 = vadd.f32 0.0, %v1091
    %v1093 = vpop.f32.mrb[0].mxu0
    %v1094 = vadd.f32 0.0, %v1093
    %v1095 = vpop.f32.mrb[0].mxu0
    %v1096 = vadd.f32 0.0, %v1095
    %v1097 = vpop.f32.mrb[0].mxu0
    %v1098 = vadd.f32 0.0, %v1097
    %1099 = vmatprep.mubr.bf16.mxu0 0
    %1100 = vmatmul.mubr.bf16.gmra.mrb[0].mxu0 %v1048
    %v1101 = vpop.f32.mrb[0].mxu0
    %v1102 = vadd.f32 0.0, %v1101
    %v1103 = vpop.f32.mrb[0].mxu0
    %v1104 = vadd.f32 0.0, %v1103
    %v1105 = vpop.f32.mrb[0].mxu0
    %v1106 = vadd.f32 0.0, %v1105
    %v1107 = vpop.f32.mrb[0].mxu0
    %v1108 = vadd.f32 0.0, %v1107
    %1109 = vmatprep.mubr.bf16.mxu0 0
    %1110 = vmatmul.mubr.bf16.gmra.mrb[0].mxu0 %v1048
    %v1111 = vpop.f32.mrb[0].mxu0
    %v1112 = vadd.f32 0.0, %v1111
    %v1113 = vpop.f32.mrb[0].mxu0
    %v1114 = vadd.f32 0.0, %v1113
    %v1115 = vpop.f32.mrb[0].mxu0
    %v1116 = vadd.f32 0.0, %v1115
    %v1117 = vpop.f32.mrb[0].mxu0
    %v1118 = vadd.f32 0.0, %v1117
    %1119 = vmatprep.mubr.bf16.mxu0 0
    %1120 = vmatmul.mubr.bf16.gmra.mrb[0].mxu0 %v1048
    %v1121 = vpop.f32.mrb[0].mxu0
    %v1122 = vadd.f32 0.0, %v1121
    %v1123 = vpop.f32.mrb[0].mxu0
    %v1124 = vadd.f32 0.0, %v1123
    %v1125 = vpop.f32.mrb[0].mxu0
    %v1126 = vadd.f32 0.0, %v1125
    %v1127 = vpop.f32.mrb[0].mxu0
    %v1128 = vadd.f32 0.0, %v1127
    %1129 = vdwg.mxu0
    %v1130 = vmul.f32 %v1092, %v609
    %v1131 = vmul.f32 %v1094, %v611
    %v1132 = vmul.f32 %v1096, %v613
    %v1133 = vmul.f32 %v1098, %v615
    %v1134 = vmul.f32 %v1102, %v619
    %v1135 = vmul.f32 %v1104, %v621
    %v1136 = vmul.f32 %v1106, %v623
    %v1137 = vmul.f32 %v1108, %v625
    %v1138 = vmul.f32 %v1112, %v629
    %v1139 = vmul.f32 %v1114, %v631
    %v1140 = vmul.f32 %v1116, %v633
    %v1141 = vmul.f32 %v1118, %v635
    %v1142 = vmul.f32 %v1122, %v639
    %v1143 = vmul.f32 %v1124, %v641
    %v1144 = vmul.f32 %v1126, %v643
    %v1145 = vmul.f32 %v1128, %v645
    %v1146 = vadd.f32 %v1130, %v1132
    %v1147 = vadd.f32 %v1146, %v1134
    %v1148 = vadd.f32 %v1147, %v1136
    %v1149 = vrot.slane %v1148, 4
    %v1150 = vadd.f32 %v1148, %v1149
    %v1151 = vrot.slane %v1150, 2
    %v1152 = vadd.f32 %v1150, %v1151
    %v1153 = vrot.slane %v1152, 1
    %v1154 = vadd.f32 %v1152, %v1153
    %v1155 = vsel %vm238, %v1131, 0.0
    %v1156 = vsel %vm238, %v1133, 0.0
    %v1157 = vadd.f32 %v1155, %v1156
    %v1158 = vsel %vm238, %v1135, 0.0
    %v1159 = vadd.f32 %v1157, %v1158
    %v1160 = vsel %vm238, %v1137, 0.0
    %v1161 = vadd.f32 %v1159, %v1160
    %v1162 = vrot.slane %v1161, 4
    %v1163 = vadd.f32 %v1161, %v1162
    %v1164 = vrot.slane %v1163, 2
    %v1165 = vadd.f32 %v1163, %v1164
    %v1166 = vrot.slane %v1165, 1
    %v1167 = vadd.f32 %v1165, %v1166
    %v1168 = vadd.f32 %v1138, %v1140
    %v1169 = vadd.f32 %v1168, %v1142
    %v1170 = vadd.f32 %v1169, %v1144
    %v1171 = vrot.slane %v1170, 4
    %v1172 = vadd.f32 %v1170, %v1171
    %v1173 = vrot.slane %v1172, 2
    %v1174 = vadd.f32 %v1172, %v1173
    %v1175 = vrot.slane %v1174, 1
    %v1176 = vadd.f32 %v1174, %v1175
    %v1177 = vsel %vm238, %v1139, 0.0
    %v1178 = vsel %vm238, %v1141, 0.0
    %v1179 = vadd.f32 %v1177, %v1178
    %v1180 = vsel %vm238, %v1143, 0.0
    %v1181 = vadd.f32 %v1179, %v1180
    %v1182 = vsel %vm238, %v1145, 0.0
    %v1183 = vadd.f32 %v1181, %v1182
    %v1184 = vrot.slane %v1183, 4
    %v1185 = vadd.f32 %v1183, %v1184
    %v1186 = vrot.slane %v1185, 2
    %v1187 = vadd.f32 %v1185, %v1186
    %v1188 = vrot.slane %v1187, 1
    %v1189 = vadd.f32 %v1187, %v1188
    %v1190 = vmul.f32 %v1154, %v1154
    %v1191 = vmul.f32 %v1167, %v1167
    %v1192 = vmul.f32 %v1176, %v1176
    %v1193 = vmul.f32 %v1189, %v1189
    %v1194 = vpack.c.bf16 %v1190, %v1190
    %v1195 = vpack.c.bf16 %v1191, %v1191
    %v1196 = vpack.c.bf16 %v1192, %v1192
    %v1197 = vpack.c.bf16 %v1193, %v1193
    %v1202 = vunpack.c.l.b16 %v1194
    %v1203 = vunpack.c.l.b16 %v1195
    %v1204 = vunpack.c.l.b16 %v1196
    %v1205 = vunpack.c.l.b16 %v1197
    %vm1206 = vcmask 1041409
    %v1207 = vsel %vm1206, %v1204, %v1202
    %v1208 = vsel %vm1206, %v1205, %v1203
    %v1209 = vpack.c.b16 %v1207, %v1207
    %v1210 = vpack.c.b16 %v1208, %v1208
    %v1213 = vsel %vm238, %v1210, 0
    %1215 = vmatprep.subr.bf16.mxu0 %v716
    %1216 = vmatpush1.bf16.msra.mxu0 %v715
    %1217 = vmatprep.subr.bf16.mxu0 %v718
    %1218 = vmatpush1.bf16.msra.mxu0 %v717
    %1219 = vmatprep.subr.bf16.mxu0 %v720
    %1220 = vmatpush1.bf16.msra.mxu0 %v719
    %1221 = vmatprep.subr.bf16.mxu0 %v722
    %1222 = vmatpush1.bf16.msra.mxu0 %v721
    %1223 = vmatprep.subr.bf16.mxu0 %v724
    %1224 = vmatpush1.bf16.msra.mxu0 %v723
    %1225 = vmatprep.subr.bf16.mxu0 %v726
    %1226 = vmatpush1.bf16.msra.mxu0 %v725
    %1227 = vmatprep.subr.bf16.mxu0 %v728
    %1228 = vmatpush1.bf16.msra.mxu0 %v727
    %1229 = vmatprep.subr.bf16.mxu0 %v730
    %1230 = vmatpush1.bf16.msra.mxu0 %v729
    %1231 = vmatprep.subr.bf16.mxu0 %v732
    %1232 = vmatpush1.bf16.msra.mxu0 %v731
    %1233 = vmatprep.subr.bf16.mxu0 %v734
    %1234 = vmatpush1.bf16.msra.mxu0 %v733
    %1235 = vmatprep.subr.bf16.mxu0 0
    %1236 = vmatpush1.bf16.msra.mxu0 0
    %1237 = vmatprep.subr.bf16.mxu0 0
    %1238 = vmatpush1.bf16.msra.mxu0 0
    %1239 = vmatprep.subr.bf16.mxu0 0
    %1240 = vmatpush1.bf16.msra.mxu0 0
    %1241 = vmatprep.subr.bf16.mxu0 0
    %1242 = vmatpush1.bf16.msra.mxu0 0
    %1243 = vmatprep.subr.bf16.mxu0 0
    %1244 = vmatpush1.bf16.msra.mxu0 0
    %1245 = vmatprep.subr.bf16.mxu0 0
    %1246 = vmatpush1.bf16.msra.mxu0 0
    %1247 = vmatprep.mubr.bf16.mxu0 %v1213
    %1248 = vmatmul.mubr.bf16.gmra.mrb[0].mxu0 %v1209
    %v1249 = vpop.f32.mrb[0].mxu0
    %v1250 = vadd.f32 0.0, %v1249
    %v1251 = vpop.f32.mrb[0].mxu0
    %v1252 = vadd.f32 0.0, %v1251
    %v1253 = vpop.f32.mrb[0].mxu0
    %v1254 = vpop.f32.mrb[0].mxu0
    %1255 = vdwg.mxu0
    %v1256 = vadd.f32 %v1250, 1.0
    %v1257 = vadd.f32 %v1252, 1.0
    %v1258 = vrcp.pop %v1256
    %v1259 = vrcp.pop %v1257
    %v1260 = vrsqrt.pop %v1250
    %v1261 = vmul.f32 %v1250, %v1260
    %vm1262 = vcmp.eq.f32.partialorder %v1250, inf
    %v1263 = vsel %vm1262, %v1250, %v1261
    %vm1264 = vcmp.eq.f32.partialorder %v1250, 0.0
    %v1265 = vand.u32 %v1250, 2147483648
    %v1266 = vsel %vm1264, %v1265, %v1263
    %v1267 = vrsqrt.pop %v1252
    %v1268 = vmul.f32 %v1252, %v1267
    %vm1269 = vcmp.eq.f32.partialorder %v1252, inf
    %v1270 = vsel %vm1269, %v1252, %v1268
    %vm1271 = vcmp.eq.f32.partialorder %v1252, 0.0
    %v1272 = vand.u32 %v1252, 2147483648
    %v1273 = vsel %vm1271, %v1272, %v1270
    %v1276 = vrot.slane %v1266, 1
    %v1277 = vrot.slane %v1273, 1
    %v1282 = vmul.f32 %v1154, %v1266
    %v1283 = vmul.f32 %v1167, %v1273
    %v1284 = vmul.f32 %v1176, %v1276
    %v1285 = vmul.f32 %v1189, %v1277
    %v1288 = vrot.slane %v1258, 1
    %v1289 = vrot.slane %v1259, 1
    %v1294 = vmul.f32 %v1282, %v1258
    %v1295 = vmul.f32 %v1283, %v1259
    %v1296 = vmul.f32 %v1284, %v1288
    %v1297 = vmul.f32 %v1285, %v1289
    %v1298 = vpack.c.bf16 %v1294, %v1294
    %v1299 = vpack.c.bf16 %v1295, %v1295
    %v1300 = vpack.c.bf16 %v1296, %v1296
    %v1301 = vpack.c.bf16 %v1297, %v1297
    %v1306 = vunpack.c.l.b16 %v1298
    %v1307 = vunpack.c.l.b16 %v1299
    %v1308 = vunpack.c.l.b16 %v1300
    %v1309 = vunpack.c.l.b16 %v1301
    %v1310 = vrot.slane %v1308, 7
    %v1311 = vsel %vm1206, %v1310, %v1306
    %v1312 = vrot.slane %v1309, 7
    %v1313 = vsel %vm1206, %v1312, %v1307
    %v1314 = vpack.c.b16 %v1311, %v1311
    %v1315 = vpack.c.b16 %v1313, %v1313
    %v1318 = vsel %vm238, %v1315, 0
    %1320 = vmatprep.subr.bf16.mxu0 %v716
    %1321 = vmatpush1.bf16.msra.mxu0 %v715
    %1322 = vmatprep.subr.bf16.mxu0 %v718
    %1323 = vmatpush1.bf16.msra.mxu0 %v717
    %1324 = vmatprep.subr.bf16.mxu0 %v720
    %1325 = vmatpush1.bf16.msra.mxu0 %v719
    %1326 = vmatprep.subr.bf16.mxu0 %v722
    %1327 = vmatpush1.bf16.msra.mxu0 %v721
    %1328 = vmatprep.subr.bf16.mxu0 %v724
    %1329 = vmatpush1.bf16.msra.mxu0 %v723
    %1330 = vmatprep.subr.bf16.mxu0 %v726
    %1331 = vmatpush1.bf16.msra.mxu0 %v725
    %1332 = vmatprep.subr.bf16.mxu0 %v728
    %1333 = vmatpush1.bf16.msra.mxu0 %v727
    %1334 = vmatprep.subr.bf16.mxu0 %v730
    %1335 = vmatpush1.bf16.msra.mxu0 %v729
    %1336 = vmatprep.subr.bf16.mxu0 %v732
    %1337 = vmatpush1.bf16.msra.mxu0 %v731
    %1338 = vmatprep.subr.bf16.mxu0 %v734
    %1339 = vmatpush1.bf16.msra.mxu0 %v733
    %1340 = vmatprep.subr.bf16.mxu0 0
    %1341 = vmatpush1.bf16.msra.mxu0 0
    %1342 = vmatprep.subr.bf16.mxu0 0
    %1343 = vmatpush1.bf16.msra.mxu0 0
    %1344 = vmatprep.subr.bf16.mxu0 0
    %1345 = vmatpush1.bf16.msra.mxu0 0
    %1346 = vmatprep.subr.bf16.mxu0 0
    %1347 = vmatpush1.bf16.msra.mxu0 0
    %1348 = vmatprep.subr.bf16.mxu0 0
    %1349 = vmatpush1.bf16.msra.mxu0 0
    %1350 = vmatprep.subr.bf16.mxu0 0
    %1351 = vmatpush1.bf16.msra.mxu0 0
    %1352 = vmatprep.mubr.bf16.mxu0 %v1318
    %1353 = vmatmul.mubr.bf16.gmra.mrb[0].mxu0 %v1314
    %v1354 = vpop.f32.mrb[0].mxu0
    %v1355 = vadd.f32 0.0, %v1354
    %v1356 = vpop.f32.mrb[0].mxu0
    %v1357 = vadd.f32 0.0, %v1356
    %v1358 = vpop.f32.mrb[0].mxu0
    %v1359 = vpop.f32.mrb[0].mxu0
    %1360 = vdwg.mxu0
    %v1361 = vmul.f32 %v1355, 0.0625
    %v1362 = vmul.f32 %v1357, 0.0625
    %v1365 = vrot.slane %v1361, 1
    %v1366 = vrot.slane %v1362, 1
    %v1371 = vsub.f32 %v1294, %v1361
    %v1372 = vsub.f32 %v1295, %v1362
    %v1373 = vsub.f32 %v1296, %v1365
    %v1374 = vsub.f32 %v1297, %v1366
    %v1375 = vmul.f32 %v1371, %v1371
    %v1376 = vmul.f32 %v1372, %v1372
    %v1377 = vmul.f32 %v1373, %v1373
    %v1378 = vmul.f32 %v1374, %v1374
    %v1379 = vpack.c.bf16 %v1375, %v1375
    %v1380 = vpack.c.bf16 %v1376, %v1376
    %v1381 = vpack.c.bf16 %v1377, %v1377
    %v1382 = vpack.c.bf16 %v1378, %v1378
    %v1387 = vunpack.c.l.b16 %v1379
    %v1388 = vunpack.c.l.b16 %v1380
    %v1389 = vunpack.c.l.b16 %v1381
    %v1390 = vunpack.c.l.b16 %v1382
    %v1391 = vrot.slane %v1389, 7
    %v1392 = vsel %vm1206, %v1391, %v1387
    %v1393 = vrot.slane %v1390, 7
    %v1394 = vsel %vm1206, %v1393, %v1388
    %v1395 = vpack.c.b16 %v1392, %v1392
    %v1396 = vpack.c.b16 %v1394, %v1394
    %v1399 = vsel %vm238, %v1396, 0
    %1401 = vmatprep.subr.bf16.mxu0 0
    %1402 = vmatpush1.bf16.msra.mxu0 %v936
    %1403 = vmatprep.subr.bf16.mxu0 0
    %1404 = vmatpush1.bf16.msra.mxu0 %v937
    %1405 = vmatprep.subr.bf16.mxu0 0
    %1406 = vmatpush1.bf16.msra.mxu0 %v938
    %1407 = vmatprep.subr.bf16.mxu0 0
    %1408 = vmatpush1.bf16.msra.mxu0 %v939
    %1409 = vmatprep.subr.bf16.mxu0 0
    %1410 = vmatpush1.bf16.msra.mxu0 %v940
    %1411 = vmatprep.subr.bf16.mxu0 0
    %1412 = vmatpush1.bf16.msra.mxu0 %v941
    %1413 = vmatprep.subr.bf16.mxu0 0
    %1414 = vmatpush1.bf16.msra.mxu0 %v942
    %1415 = vmatprep.subr.bf16.mxu0 0
    %1416 = vmatpush1.bf16.msra.mxu0 %v943
    %1417 = vmatprep.subr.bf16.mxu0 0
    %1418 = vmatpush1.bf16.msra.mxu0 %v944
    %1419 = vmatprep.subr.bf16.mxu0 0
    %1420 = vmatpush1.bf16.msra.mxu0 %v945
    %1421 = vmatprep.subr.bf16.mxu0 0
    %1422 = vmatpush1.bf16.msra.mxu0 0
    %1423 = vmatprep.subr.bf16.mxu0 0
    %1424 = vmatpush1.bf16.msra.mxu0 0
    %1425 = vmatprep.subr.bf16.mxu0 0
    %1426 = vmatpush1.bf16.msra.mxu0 0
    %1427 = vmatprep.subr.bf16.mxu0 0
    %1428 = vmatpush1.bf16.msra.mxu0 0
    %1429 = vmatprep.subr.bf16.mxu0 0
    %1430 = vmatpush1.bf16.msra.mxu0 0
    %1431 = vmatprep.subr.bf16.mxu0 0
    %1432 = vmatpush1.bf16.msra.mxu0 0
    %1433 = vmatprep.mubr.bf16.mxu0 %v1399
    %1434 = vmatmul.mubr.bf16.gmra.mrb[0].mxu0 %v1395
    %v1435 = vpop.f32.mrb[0].mxu0
    %v1436 = vadd.f32 0.0, %v1435
    %v1437 = vpop.f32.mrb[0].mxu0
    %v1438 = vpop.f32.mrb[0].mxu0
    %v1439 = vpop.f32.mrb[0].mxu0
    %1440 = vdwg.mxu0
    %v1441 = vlaneseq
    %v1442 = vshrl.u32 %v1441, 7
    %v1443 = vsub.s32 0, %v1442
    %v1444 = vrot.slane %v1371, %v1443
    %v1445 = vlaneseq
    %v1446 = vshrl.u32 %v1445, 7
    %v1447 = vsub.s32 0, %v1446
    %v1448 = vrot.slane %v1372, %v1447
    %v1449 = vlaneseq
    %v1450 = vshrl.u32 %v1449, 7
    %v1451 = vsub.s32 0, %v1450
    %v1452 = vrot.slane %v1373, %v1451
    %v1453 = vlaneseq
    %v1454 = vshrl.u32 %v1453, 7
    %v1455 = vsub.s32 0, %v1454
    %v1456 = vrot.slane %v1374, %v1455
    %v1457 = vmul.f32 %v856, %v1444
    %v1458 = vmul.f32 %v857, %v1448
    %v1459 = vmul.f32 %v858, %v1444
    %v1460 = vmul.f32 %v859, %v1448
    %v1461 = vmul.f32 %v860, %v1444
    %v1462 = vmul.f32 %v861, %v1448
    %v1463 = vmul.f32 %v862, %v1444
    %v1464 = vmul.f32 %v863, %v1448
    %v1465 = vmul.f32 %v864, %v1452
    %v1466 = vmul.f32 %v865, %v1456
    %v1467 = vmul.f32 %v866, %v1452
    %v1468 = vmul.f32 %v867, %v1456
    %v1469 = vmul.f32 %v868, %v1452
    %v1470 = vmul.f32 %v869, %v1456
    %v1471 = vmul.f32 %v870, %v1452
    %v1472 = vmul.f32 %v871, %v1456
    %v1473 = vpack.c.bf16 %v1459, %v1457
    %v1474 = vpack.c.bf16 %v1460, %v1458
    %v1475 = vpack.c.bf16 %v1463, %v1461
    %v1476 = vpack.c.bf16 %v1464, %v1462
    %v1477 = vpack.c.bf16 %v1467, %v1465
    %v1478 = vpack.c.bf16 %v1468, %v1466
    %v1479 = vpack.c.bf16 %v1471, %v1469
    %v1480 = vpack.c.bf16 %v1472, %v1470
    %v1482 = vsel %vm238, %v1474, 0
    %v1485 = vsel %vm238, %v1476, 0
    %v1488 = vsel %vm238, %v1478, 0
    %v1491 = vsel %vm238, %v1480, 0
    %1493 = vmatprep.subr.bf16.mxu0 0
    %1494 = vmatpush1.bf16.msra.mxu0 %v936
    %1495 = vmatprep.subr.bf16.mxu0 0
    %1496 = vmatpush1.bf16.msra.mxu0 %v937
    %1497 = vmatprep.subr.bf16.mxu0 0
    %1498 = vmatpush1.bf16.msra.mxu0 %v938
    %1499 = vmatprep.subr.bf16.mxu0 0
    %1500 = vmatpush1.bf16.msra.mxu0 %v939
    %1501 = vmatprep.subr.bf16.mxu0 0
    %1502 = vmatpush1.bf16.msra.mxu0 %v940
    %1503 = vmatprep.subr.bf16.mxu0 0
    %1504 = vmatpush1.bf16.msra.mxu0 %v941
    %1505 = vmatprep.subr.bf16.mxu0 0
    %1506 = vmatpush1.bf16.msra.mxu0 %v942
    %1507 = vmatprep.subr.bf16.mxu0 0
    %1508 = vmatpush1.bf16.msra.mxu0 %v943
    %1509 = vmatprep.subr.bf16.mxu0 0
    %1510 = vmatpush1.bf16.msra.mxu0 %v944
    %1511 = vmatprep.subr.bf16.mxu0 0
    %1512 = vmatpush1.bf16.msra.mxu0 %v945
    %1513 = vmatprep.subr.bf16.mxu0 0
    %1514 = vmatpush1.bf16.msra.mxu0 0
    %1515 = vmatprep.subr.bf16.mxu0 0
    %1516 = vmatpush1.bf16.msra.mxu0 0
    %1517 = vmatprep.subr.bf16.mxu0 0
    %1518 = vmatpush1.bf16.msra.mxu0 0
    %1519 = vmatprep.subr.bf16.mxu0 0
    %1520 = vmatpush1.bf16.msra.mxu0 0
    %1521 = vmatprep.subr.bf16.mxu0 0
    %1522 = vmatpush1.bf16.msra.mxu0 0
    %1523 = vmatprep.subr.bf16.mxu0 0
    %1524 = vmatpush1.bf16.msra.mxu0 0
    %1525 = vmatprep.mubr.bf16.mxu0 %v1482
    %1526 = vmatmul.mubr.bf16.gmra.mrb[0].mxu0 %v1473
    %v1527 = vpop.f32.mrb[0].mxu0
    %v1528 = vadd.f32 0.0, %v1527
    %v1529 = vpop.f32.mrb[0].mxu0
    %v1530 = vpop.f32.mrb[0].mxu0
    %v1531 = vadd.f32 0.0, %v1530
    %v1532 = vpop.f32.mrb[0].mxu0
    %1533 = vmatprep.mubr.bf16.mxu0 %v1485
    %1534 = vmatmul.mubr.bf16.gmra.mrb[0].mxu0 %v1475
    %v1535 = vpop.f32.mrb[0].mxu0
    %v1536 = vadd.f32 0.0, %v1535
    %v1537 = vpop.f32.mrb[0].mxu0
    %v1538 = vpop.f32.mrb[0].mxu0
    %v1539 = vadd.f32 0.0, %v1538
    %v1540 = vpop.f32.mrb[0].mxu0
    %1541 = vmatprep.mubr.bf16.mxu0 %v1488
    %1542 = vmatmul.mubr.bf16.gmra.mrb[0].mxu0 %v1477
    %v1543 = vpop.f32.mrb[0].mxu0
    %v1544 = vadd.f32 0.0, %v1543
    %v1545 = vpop.f32.mrb[0].mxu0
    %v1546 = vpop.f32.mrb[0].mxu0
    %v1547 = vadd.f32 0.0, %v1546
    %v1548 = vpop.f32.mrb[0].mxu0
    %1549 = vmatprep.mubr.bf16.mxu0 %v1491
    %1550 = vmatmul.mubr.bf16.gmra.mrb[0].mxu0 %v1479
    %v1551 = vpop.f32.mrb[0].mxu0
    %v1552 = vadd.f32 0.0, %v1551
    %v1553 = vpop.f32.mrb[0].mxu0
    %v1554 = vpop.f32.mrb[0].mxu0
    %v1555 = vadd.f32 0.0, %v1554
    %v1556 = vpop.f32.mrb[0].mxu0
    %1557 = vdwg.mxu0
    %v1560 = vunpack.c.l.s4 1966171168
    %v1561 = vunpack.c.0.s8 %v1560
    %v1562 = vlaneseq
    %v1563 = vshrl.u32 %v1562, 7
    %v1564 = vsub.s32 %v1561, %v1563
    %v1565 = vrot.slane %v1436, %v1564
    %v1566 = vcombine.high %v1565, %v1565
    %v1568 = vunpack.c.l.s4 1966171168
    %v1569 = vunpack.c.0.s8 %v1568
    %v1570 = vlaneseq
    %v1571 = vshrl.u32 %v1570, 7
    %v1572 = vsub.s32 %v1569, %v1571
    %v1573 = vrot.slane %v1565, %v1572
    %v1575 = vunpack.c.l.s4 1966171168
    %v1576 = vunpack.c.0.s8 %v1575
    %v1577 = vlaneseq
    %v1578 = vshrl.u32 %v1577, 7
    %v1579 = vsub.s32 %v1576, %v1578
    %v1580 = vrot.slane %v1566, %v1579
    %v1581 = vlaneseq
    %v1582 = vshrl.u32 %v1581, 7
    %v1583 = vsub.s32 0, %v1582
    %v1584 = vrot.slane %v1573, %v1583
    %v1585 = vlaneseq
    %v1586 = vshrl.u32 %v1585, 7
    %v1587 = vsub.s32 0, %v1586
    %v1588 = vrot.slane %v1580, %v1587
    %v1591 = vmul.f32 %v1003, %v1584
    %v1592 = vmul.f32 %v1006, %v1584
    %v1593 = vmul.f32 %v1011, %v1584
    %v1594 = vmul.f32 %v1014, %v1584
    %v1595 = vmul.f32 %v1019, %v1588
    %v1596 = vmul.f32 %v1022, %v1588
    %v1597 = vmul.f32 %v1027, %v1588
    %v1598 = vmul.f32 %v1030, %v1588
    %v1599 = vadd.f32 %v1591, 1e-30
    %v1600 = vadd.f32 %v1592, 1e-30
    %v1601 = vadd.f32 %v1593, 1e-30
    %v1602 = vadd.f32 %v1594, 1e-30
    %v1603 = vadd.f32 %v1595, 1e-30
    %v1604 = vadd.f32 %v1596, 1e-30
    %v1605 = vadd.f32 %v1597, 1e-30
    %v1606 = vadd.f32 %v1598, 1e-30
    %v1607 = vrsqrt.pop %v1599
    %v1608 = vrsqrt.pop %v1600
    %v1609 = vrsqrt.pop %v1601
    %v1610 = vrsqrt.pop %v1602
    %v1611 = vrsqrt.pop %v1603
    %v1612 = vrsqrt.pop %v1604
    %v1613 = vrsqrt.pop %v1605
    %v1614 = vrsqrt.pop %v1606
    %v1615 = vmul.f32 %v1528, %v1607
    %v1616 = vmul.f32 %v1531, %v1608
    %v1617 = vmul.f32 %v1536, %v1609
    %v1618 = vmul.f32 %v1539, %v1610
    %v1619 = vmul.f32 %v1544, %v1611
    %v1620 = vmul.f32 %v1547, %v1612
    %v1621 = vmul.f32 %v1552, %v1613
    %v1622 = vmul.f32 %v1555, %v1614
    %v1623 = vadd.f32 %v1615, 0.0
    %v1624 = vadd.f32 %v1616, 0.0
    %v1625 = vadd.f32 %v1617, 0.0
    %v1626 = vadd.f32 %v1618, 0.0
    %v1627 = vadd.f32 %v1619, 0.0
    %v1628 = vadd.f32 %v1620, 0.0
    %v1629 = vadd.f32 %v1621, 0.0
    %v1630 = vadd.f32 %v1622, 0.0
    %v1631 = vmul.f32 %v1623, 1.442695
    %v1632 = vpow.pop %v1631
    %v1633 = vmul.f32 %v1624, 1.442695
    %v1634 = vpow.pop %v1633
    %v1635 = vmul.f32 %v1625, 1.442695
    %v1636 = vpow.pop %v1635
    %v1637 = vmul.f32 %v1626, 1.442695
    %v1638 = vpow.pop %v1637
    %v1639 = vmul.f32 %v1627, 1.442695
    %v1640 = vpow.pop %v1639
    %v1641 = vmul.f32 %v1628, 1.442695
    %v1642 = vpow.pop %v1641
    %v1643 = vmul.f32 %v1629, 1.442695
    %v1644 = vpow.pop %v1643
    %v1645 = vmul.f32 %v1630, 1.442695
    %v1646 = vpow.pop %v1645
    %v1647 = vsel %vm1033, %v1632, 0.0
    %1648 = vadd.xlane.f32.xlu0 %v1647
    %v1649 = vpop.xlane.xlu0 %1648
    %v1650 = vsel %vm1033, %v1634, 0.0
    %1651 = vadd.xlane.f32.xlu0 %v1650
    %v1652 = vpop.xlane.xlu0 %1651
    %v1653 = vsel %vm1033, %v1636, 0.0
    %1654 = vadd.xlane.f32.xlu0 %v1653
    %v1655 = vpop.xlane.xlu0 %1654
    %v1656 = vsel %vm1033, %v1638, 0.0
    %1657 = vadd.xlane.f32.xlu0 %v1656
    %v1658 = vpop.xlane.xlu0 %1657
    %v1659 = vsel %vm1033, %v1640, 0.0
    %1660 = vadd.xlane.f32.xlu0 %v1659
    %v1661 = vpop.xlane.xlu0 %1660
    %v1662 = vsel %vm1033, %v1642, 0.0
    %1663 = vadd.xlane.f32.xlu0 %v1662
    %v1664 = vpop.xlane.xlu0 %1663
    %v1665 = vsel %vm1033, %v1644, 0.0
    %1666 = vadd.xlane.f32.xlu0 %v1665
    %v1667 = vpop.xlane.xlu0 %1666
    %v1668 = vsel %vm1033, %v1646, 0.0
    %1669 = vadd.xlane.f32.xlu0 %v1668
    %v1670 = vpop.xlane.xlu0 %1669
    %v1671 = vrcp.pop %v1649
    %v1672 = vrcp.pop %v1652
    %v1673 = vrcp.pop %v1655
    %v1674 = vrcp.pop %v1658
    %v1675 = vrcp.pop %v1661
    %v1676 = vrcp.pop %v1664
    %v1677 = vrcp.pop %v1667
    %v1678 = vrcp.pop %v1670
    %v1679 = vmul.f32 %v1632, %v1671
    %v1680 = vmul.f32 %v1634, %v1672
    %v1681 = vmul.f32 %v1636, %v1673
    %v1682 = vmul.f32 %v1638, %v1674
    %v1683 = vmul.f32 %v1640, %v1675
    %v1684 = vmul.f32 %v1642, %v1676
    %v1685 = vmul.f32 %v1644, %v1677
    %v1686 = vmul.f32 %v1646, %v1678
    %v1687 = vpack.c.bf16 %v1680, %v1679
    %v1688 = vpack.c.bf16 %v1682, %v1681
    %v1689 = vpack.c.bf16 %v1684, %v1683
    %v1690 = vpack.c.bf16 %v1686, %v1685
    %v1692 = vsel %vm1033, %v1687, 0
    %v1695 = vsel %vm1033, %v1688, 0
    %v1698 = vsel %vm1033, %v1689, 0
    %v1701 = vsel %vm1033, %v1690, 0
    %1703 = vmatprep.subr.bf16.mxu0 %v1055
    %1704 = vmatpush1.bf16.msra.mxu0 %v1052
    %1705 = vmatprep.subr.bf16.mxu0 0
    %1706 = vmatpush1.bf16.msra.mxu0 0
    %1707 = vmatprep.subr.bf16.mxu0 0
    %1708 = vmatpush1.bf16.msra.mxu0 0
    %1709 = vmatprep.subr.bf16.mxu0 0
    %1710 = vmatpush1.bf16.msra.mxu0 0
    %1711 = vmatprep.subr.bf16.mxu0 0
    %1712 = vmatpush1.bf16.msra.mxu0 0
    %1713 = vmatprep.subr.bf16.mxu0 0
    %1714 = vmatpush1.bf16.msra.mxu0 0
    %1715 = vmatprep.subr.bf16.mxu0 0
    %1716 = vmatpush1.bf16.msra.mxu0 0
    %1717 = vmatprep.subr.bf16.mxu0 0
    %1718 = vmatpush1.bf16.msra.mxu0 0
    %1719 = vmatprep.subr.bf16.mxu0 0
    %1720 = vmatpush1.bf16.msra.mxu0 0
    %1721 = vmatprep.subr.bf16.mxu0 0
    %1722 = vmatpush1.bf16.msra.mxu0 0
    %1723 = vmatprep.subr.bf16.mxu0 0
    %1724 = vmatpush1.bf16.msra.mxu0 0
    %1725 = vmatprep.subr.bf16.mxu0 0
    %1726 = vmatpush1.bf16.msra.mxu0 0
    %1727 = vmatprep.subr.bf16.mxu0 0
    %1728 = vmatpush1.bf16.msra.mxu0 0
    %1729 = vmatprep.subr.bf16.mxu0 0
    %1730 = vmatpush1.bf16.msra.mxu0 0
    %1731 = vmatprep.subr.bf16.mxu0 0
    %1732 = vmatpush1.bf16.msra.mxu0 0
    %1733 = vmatprep.subr.bf16.mxu0 0
    %1734 = vmatpush1.bf16.msra.mxu0 0
    %1735 = vmatprep.mubr.bf16.mxu0 0
    %1736 = vmatmul.mubr.bf16.gmra.mrb[0].mxu0 %v1692
    %v1737 = vpop.f32.mrb[0].mxu0
    %v1738 = vadd.f32 0.0, %v1737
    %v1739 = vpop.f32.mrb[0].mxu0
    %v1740 = vadd.f32 0.0, %v1739
    %v1741 = vpop.f32.mrb[0].mxu0
    %v1742 = vadd.f32 0.0, %v1741
    %v1743 = vpop.f32.mrb[0].mxu0
    %v1744 = vadd.f32 0.0, %v1743
    %1745 = vmatprep.mubr.bf16.mxu0 0
    %1746 = vmatmul.mubr.bf16.gmra.mrb[0].mxu0 %v1695
    %v1747 = vpop.f32.mrb[0].mxu0
    %v1748 = vadd.f32 0.0, %v1747
    %v1749 = vpop.f32.mrb[0].mxu0
    %v1750 = vadd.f32 0.0, %v1749
    %v1751 = vpop.f32.mrb[0].mxu0
    %v1752 = vadd.f32 0.0, %v1751
    %v1753 = vpop.f32.mrb[0].mxu0
    %v1754 = vadd.f32 0.0, %v1753
    %1755 = vmatprep.mubr.bf16.mxu0 0
    %1756 = vmatmul.mubr.bf16.gmra.mrb[0].mxu0 %v1698
    %v1757 = vpop.f32.mrb[0].mxu0
    %v1758 = vadd.f32 0.0, %v1757
    %v1759 = vpop.f32.mrb[0].mxu0
    %v1760 = vadd.f32 0.0, %v1759
    %v1761 = vpop.f32.mrb[0].mxu0
    %v1762 = vadd.f32 0.0, %v1761
    %v1763 = vpop.f32.mrb[0].mxu0
    %v1764 = vadd.f32 0.0, %v1763
    %1765 = vmatprep.mubr.bf16.mxu0 0
    %1766 = vmatmul.mubr.bf16.gmra.mrb[0].mxu0 %v1701
    %v1767 = vpop.f32.mrb[0].mxu0
    %v1768 = vadd.f32 0.0, %v1767
    %v1769 = vpop.f32.mrb[0].mxu0
    %v1770 = vadd.f32 0.0, %v1769
    %v1771 = vpop.f32.mrb[0].mxu0
    %v1772 = vadd.f32 0.0, %v1771
    %v1773 = vpop.f32.mrb[0].mxu0
    %v1774 = vadd.f32 0.0, %v1773
    %1775 = vdwg.mxu0
    %v1776 = vmul.f32 %v1738, %v609
    %v1777 = vmul.f32 %v1740, %v611
    %v1778 = vmul.f32 %v1742, %v613
    %v1779 = vmul.f32 %v1744, %v615
    %v1780 = vmul.f32 %v1748, %v619
    %v1781 = vmul.f32 %v1750, %v621
    %v1782 = vmul.f32 %v1752, %v623
    %v1783 = vmul.f32 %v1754, %v625
    %v1784 = vmul.f32 %v1758, %v629
    %v1785 = vmul.f32 %v1760, %v631
    %v1786 = vmul.f32 %v1762, %v633
    %v1787 = vmul.f32 %v1764, %v635
    %v1788 = vmul.f32 %v1768, %v639
    %v1789 = vmul.f32 %v1770, %v641
    %v1790 = vmul.f32 %v1772, %v643
    %v1791 = vmul.f32 %v1774, %v645
    %v1792 = vadd.f32 %v1776, %v1778
    %v1793 = vadd.f32 %v1792, %v1780
    %v1794 = vadd.f32 %v1793, %v1782
    %v1795 = vrot.slane %v1794, 4
    %v1796 = vadd.f32 %v1794, %v1795
    %v1797 = vrot.slane %v1796, 2
    %v1798 = vadd.f32 %v1796, %v1797
    %v1799 = vrot.slane %v1798, 1
    %v1800 = vadd.f32 %v1798, %v1799
    %v1801 = vsel %vm238, %v1777, 0.0
    %v1802 = vsel %vm238, %v1779, 0.0
    %v1803 = vadd.f32 %v1801, %v1802
    %v1804 = vsel %vm238, %v1781, 0.0
    %v1805 = vadd.f32 %v1803, %v1804
    %v1806 = vsel %vm238, %v1783, 0.0
    %v1807 = vadd.f32 %v1805, %v1806
    %v1808 = vrot.slane %v1807, 4
    %v1809 = vadd.f32 %v1807, %v1808
    %v1810 = vrot.slane %v1809, 2
    %v1811 = vadd.f32 %v1809, %v1810
    %v1812 = vrot.slane %v1811, 1
    %v1813 = vadd.f32 %v1811, %v1812
    %v1814 = vadd.f32 %v1784, %v1786
    %v1815 = vadd.f32 %v1814, %v1788
    %v1816 = vadd.f32 %v1815, %v1790
    %v1817 = vrot.slane %v1816, 4
    %v1818 = vadd.f32 %v1816, %v1817
    %v1819 = vrot.slane %v1818, 2
    %v1820 = vadd.f32 %v1818, %v1819
    %v1821 = vrot.slane %v1820, 1
    %v1822 = vadd.f32 %v1820, %v1821
    %v1823 = vsel %vm238, %v1785, 0.0
    %v1824 = vsel %vm238, %v1787, 0.0
    %v1825 = vadd.f32 %v1823, %v1824
    %v1826 = vsel %vm238, %v1789, 0.0
    %v1827 = vadd.f32 %v1825, %v1826
    %v1828 = vsel %vm238, %v1791, 0.0
    %v1829 = vadd.f32 %v1827, %v1828
    %v1830 = vrot.slane %v1829, 4
    %v1831 = vadd.f32 %v1829, %v1830
    %v1832 = vrot.slane %v1831, 2
    %v1833 = vadd.f32 %v1831, %v1832
    %v1834 = vrot.slane %v1833, 1
    %v1835 = vadd.f32 %v1833, %v1834
    %v1836 = vmul.f32 %v1800, %v1800
    %v1837 = vmul.f32 %v1813, %v1813
    %v1838 = vmul.f32 %v1822, %v1822
    %v1839 = vmul.f32 %v1835, %v1835
    %v1840 = vpack.c.bf16 %v1836, %v1836
    %v1841 = vpack.c.bf16 %v1837, %v1837
    %v1842 = vpack.c.bf16 %v1838, %v1838
    %v1843 = vpack.c.bf16 %v1839, %v1839
    %v1848 = vunpack.c.l.b16 %v1840
    %v1849 = vunpack.c.l.b16 %v1841
    %v1850 = vunpack.c.l.b16 %v1842
    %v1851 = vunpack.c.l.b16 %v1843
    %v1852 = vsel %vm1206, %v1850, %v1848
    %v1853 = vsel %vm1206, %v1851, %v1849
    %v1854 = vpack.c.b16 %v1852, %v1852
    %v1855 = vpack.c.b16 %v1853, %v1853
    %v1858 = vsel %vm238, %v1855, 0
    %1860 = vmatprep.subr.bf16.mxu0 %v716
    %1861 = vmatpush1.bf16.msra.mxu0 %v715
    %1862 = vmatprep.subr.bf16.mxu0 %v718
    %1863 = vmatpush1.bf16.msra.mxu0 %v717
    %1864 = vmatprep.subr.bf16.mxu0 %v720
    %1865 = vmatpush1.bf16.msra.mxu0 %v719
    %1866 = vmatprep.subr.bf16.mxu0 %v722
    %1867 = vmatpush1.bf16.msra.mxu0 %v721
    %1868 = vmatprep.subr.bf16.mxu0 %v724
    %1869 = vmatpush1.bf16.msra.mxu0 %v723
    %1870 = vmatprep.subr.bf16.mxu0 %v726
    %1871 = vmatpush1.bf16.msra.mxu0 %v725
    %1872 = vmatprep.subr.bf16.mxu0 %v728
    %1873 = vmatpush1.bf16.msra.mxu0 %v727
    %1874 = vmatprep.subr.bf16.mxu0 %v730
    %1875 = vmatpush1.bf16.msra.mxu0 %v729
    %1876 = vmatprep.subr.bf16.mxu0 %v732
    %1877 = vmatpush1.bf16.msra.mxu0 %v731
    %1878 = vmatprep.subr.bf16.mxu0 %v734
    %1879 = vmatpush1.bf16.msra.mxu0 %v733
    %1880 = vmatprep.subr.bf16.mxu0 0
    %1881 = vmatpush1.bf16.msra.mxu0 0
    %1882 = vmatprep.subr.bf16.mxu0 0
    %1883 = vmatpush1.bf16.msra.mxu0 0
    %1884 = vmatprep.subr.bf16.mxu0 0
    %1885 = vmatpush1.bf16.msra.mxu0 0
    %1886 = vmatprep.subr.bf16.mxu0 0
    %1887 = vmatpush1.bf16.msra.mxu0 0
    %1888 = vmatprep.subr.bf16.mxu0 0
    %1889 = vmatpush1.bf16.msra.mxu0 0
    %1890 = vmatprep.subr.bf16.mxu0 0
    %1891 = vmatpush1.bf16.msra.mxu0 0
    %1892 = vmatprep.mubr.bf16.mxu0 %v1858
    %1893 = vmatmul.mubr.bf16.gmra.mrb[0].mxu0 %v1854
    %v1894 = vpop.f32.mrb[0].mxu0
    %v1895 = vadd.f32 0.0, %v1894
    %v1896 = vpop.f32.mrb[0].mxu0
    %v1897 = vadd.f32 0.0, %v1896
    %v1898 = vpop.f32.mrb[0].mxu0
    %v1899 = vpop.f32.mrb[0].mxu0
    %1900 = vdwg.mxu0
    %v1901 = vadd.f32 %v1895, 1.0
    %v1902 = vadd.f32 %v1897, 1.0
    %v1903 = vrcp.pop %v1901
    %v1904 = vrcp.pop %v1902
    %v1905 = vrsqrt.pop %v1895
    %v1906 = vmul.f32 %v1895, %v1905
    %vm1907 = vcmp.eq.f32.partialorder %v1895, inf
    %v1908 = vsel %vm1907, %v1895, %v1906
    %vm1909 = vcmp.eq.f32.partialorder %v1895, 0.0
    %v1910 = vand.u32 %v1895, 2147483648
    %v1911 = vsel %vm1909, %v1910, %v1908
    %v1912 = vrsqrt.pop %v1897
    %v1913 = vmul.f32 %v1897, %v1912
    %vm1914 = vcmp.eq.f32.partialorder %v1897, inf
    %v1915 = vsel %vm1914, %v1897, %v1913
    %vm1916 = vcmp.eq.f32.partialorder %v1897, 0.0
    %v1917 = vand.u32 %v1897, 2147483648
    %v1918 = vsel %vm1916, %v1917, %v1915
    %v1921 = vrot.slane %v1911, 1
    %v1922 = vrot.slane %v1918, 1
    %v1927 = vmul.f32 %v1800, %v1911
    %v1928 = vmul.f32 %v1813, %v1918
    %v1929 = vmul.f32 %v1822, %v1921
    %v1930 = vmul.f32 %v1835, %v1922
    %v1933 = vrot.slane %v1903, 1
    %v1934 = vrot.slane %v1904, 1
    %v1939 = vmul.f32 %v1927, %v1903
    %v1940 = vmul.f32 %v1928, %v1904
    %v1941 = vmul.f32 %v1929, %v1933
    %v1942 = vmul.f32 %v1930, %v1934
    %1943 = vmatprep.subr.bf16.mxu0 0
    %1944 = vmatpush1.bf16.msra.mxu0 %v936
    %1945 = vmatprep.subr.bf16.mxu0 0
    %1946 = vmatpush1.bf16.msra.mxu0 %v937
    %1947 = vmatprep.subr.bf16.mxu0 0
    %1948 = vmatpush1.bf16.msra.mxu0 %v938
    %1949 = vmatprep.subr.bf16.mxu0 0
    %1950 = vmatpush1.bf16.msra.mxu0 %v939
    %1951 = vmatprep.subr.bf16.mxu0 0
    %1952 = vmatpush1.bf16.msra.mxu0 %v940
    %1953 = vmatprep.subr.bf16.mxu0 0
    %1954 = vmatpush1.bf16.msra.mxu0 %v941
    %1955 = vmatprep.subr.bf16.mxu0 0
    %1956 = vmatpush1.bf16.msra.mxu0 %v942
    %1957 = vmatprep.subr.bf16.mxu0 0
    %1958 = vmatpush1.bf16.msra.mxu0 %v943
    %1959 = vmatprep.subr.bf16.mxu0 0
    %1960 = vmatpush1.bf16.msra.mxu0 %v944
    %1961 = vmatprep.subr.bf16.mxu0 0
    %1962 = vmatpush1.bf16.msra.mxu0 %v945
    %1963 = vmatprep.subr.bf16.mxu0 0
    %1964 = vmatpush1.bf16.msra.mxu0 0
    %1965 = vmatprep.subr.bf16.mxu0 0
    %1966 = vmatpush1.bf16.msra.mxu0 0
    %1967 = vmatprep.subr.bf16.mxu0 0
    %1968 = vmatpush1.bf16.msra.mxu0 0
    %1969 = vmatprep.subr.bf16.mxu0 0
    %1970 = vmatpush1.bf16.msra.mxu0 0
    %1971 = vmatprep.subr.bf16.mxu0 0
    %1972 = vmatpush1.bf16.msra.mxu0 0
    %1973 = vmatprep.subr.bf16.mxu0 0
    %1974 = vmatpush1.bf16.msra.mxu0 0
    %1975 = vmatprep.mubr.bf16.mxu0 %v1858
    %1976 = vmatmul.mubr.bf16.gmra.mrb[0].mxu0 %v1854
    %v1977 = vpop.f32.mrb[0].mxu0
    %v1978 = vadd.f32 0.0, %v1977
    %v1979 = vpop.f32.mrb[0].mxu0
    %v1980 = vpop.f32.mrb[0].mxu0
    %v1981 = vpop.f32.mrb[0].mxu0
    %1982 = vdwg.mxu0
    %v1983 = vadd.f32 %v1978, 1.0
    %v1984 = vrcp.pop %v1983
    %v1985 = vmul.f32 %v1978, %v1984
    %v1986 = vpack.c.bf16 %v1939, %v1939
    %v1987 = vpack.c.bf16 %v1940, %v1940
    %v1988 = vpack.c.bf16 %v1941, %v1941
    %v1989 = vpack.c.bf16 %v1942, %v1942
    %v1994 = vunpack.c.l.b16 %v1986
    %v1995 = vunpack.c.l.b16 %v1987
    %v1996 = vunpack.c.l.b16 %v1988
    %v1997 = vunpack.c.l.b16 %v1989
    %v1998 = vrot.slane %v1996, 7
    %v1999 = vsel %vm1206, %v1998, %v1994
    %v2000 = vrot.slane %v1997, 7
    %v2001 = vsel %vm1206, %v2000, %v1995
    %v2002 = vpack.c.b16 %v1999, %v1999
    %v2003 = vpack.c.b16 %v2001, %v2001
    %v2006 = vsel %vm238, %v2003, 0
    %2008 = vmatprep.subr.bf16.mxu0 %v716
    %2009 = vmatpush1.bf16.msra.mxu0 %v715
    %2010 = vmatprep.subr.bf16.mxu0 %v718
    %2011 = vmatpush1.bf16.msra.mxu0 %v717
    %2012 = vmatprep.subr.bf16.mxu0 %v720
    %2013 = vmatpush1.bf16.msra.mxu0 %v719
    %2014 = vmatprep.subr.bf16.mxu0 %v722
    %2015 = vmatpush1.bf16.msra.mxu0 %v721
    %2016 = vmatprep.subr.bf16.mxu0 %v724
    %2017 = vmatpush1.bf16.msra.mxu0 %v723
    %2018 = vmatprep.subr.bf16.mxu0 %v726
    %2019 = vmatpush1.bf16.msra.mxu0 %v725
    %2020 = vmatprep.subr.bf16.mxu0 %v728
    %2021 = vmatpush1.bf16.msra.mxu0 %v727
    %2022 = vmatprep.subr.bf16.mxu0 %v730
    %2023 = vmatpush1.bf16.msra.mxu0 %v729
    %2024 = vmatprep.subr.bf16.mxu0 %v732
    %2025 = vmatpush1.bf16.msra.mxu0 %v731
    %2026 = vmatprep.subr.bf16.mxu0 %v734
    %2027 = vmatpush1.bf16.msra.mxu0 %v733
    %2028 = vmatprep.subr.bf16.mxu0 0
    %2029 = vmatpush1.bf16.msra.mxu0 0
    %2030 = vmatprep.subr.bf16.mxu0 0
    %2031 = vmatpush1.bf16.msra.mxu0 0
    %2032 = vmatprep.subr.bf16.mxu0 0
    %2033 = vmatpush1.bf16.msra.mxu0 0
    %2034 = vmatprep.subr.bf16.mxu0 0
    %2035 = vmatpush1.bf16.msra.mxu0 0
    %2036 = vmatprep.subr.bf16.mxu0 0
    %2037 = vmatpush1.bf16.msra.mxu0 0
    %2038 = vmatprep.subr.bf16.mxu0 0
    %2039 = vmatpush1.bf16.msra.mxu0 0
    %2040 = vmatprep.mubr.bf16.mxu0 %v2006
    %2041 = vmatmul.mubr.bf16.gmra.mrb[0].mxu0 %v2002
    %v2042 = vpop.f32.mrb[0].mxu0
    %v2043 = vadd.f32 0.0, %v2042
    %v2044 = vpop.f32.mrb[0].mxu0
    %v2045 = vadd.f32 0.0, %v2044
    %v2046 = vpop.f32.mrb[0].mxu0
    %v2047 = vpop.f32.mrb[0].mxu0
    %2048 = vdwg.mxu0
    %v2049 = vmul.f32 %v2043, 0.0625
    %v2050 = vmul.f32 %v2045, 0.0625
    %v2053 = vrot.slane %v2049, 1
    %v2054 = vrot.slane %v2050, 1
    %v2059 = vsub.f32 %v1939, %v2049
    %v2060 = vsub.f32 %v1940, %v2050
    %v2061 = vsub.f32 %v1941, %v2053
    %v2062 = vsub.f32 %v1942, %v2054
    %v2063 = vmul.f32 %v2059, %v2059
    %v2064 = vmul.f32 %v2060, %v2060
    %v2065 = vmul.f32 %v2061, %v2061
    %v2066 = vmul.f32 %v2062, %v2062
    %v2067 = vpack.c.bf16 %v2063, %v2063
    %v2068 = vpack.c.bf16 %v2064, %v2064
    %v2069 = vpack.c.bf16 %v2065, %v2065
    %v2070 = vpack.c.bf16 %v2066, %v2066
    %v2075 = vunpack.c.l.b16 %v2067
    %v2076 = vunpack.c.l.b16 %v2068
    %v2077 = vunpack.c.l.b16 %v2069
    %v2078 = vunpack.c.l.b16 %v2070
    %v2079 = vrot.slane %v2077, 7
    %v2080 = vsel %vm1206, %v2079, %v2075
    %v2081 = vrot.slane %v2078, 7
    %v2082 = vsel %vm1206, %v2081, %v2076
    %v2083 = vpack.c.b16 %v2080, %v2080
    %v2084 = vpack.c.b16 %v2082, %v2082
    %v2087 = vsel %vm238, %v2084, 0
    %2089 = vmatprep.subr.bf16.mxu0 0
    %2090 = vmatpush1.bf16.msra.mxu0 %v936
    %2091 = vmatprep.subr.bf16.mxu0 0
    %2092 = vmatpush1.bf16.msra.mxu0 %v937
    %2093 = vmatprep.subr.bf16.mxu0 0
    %2094 = vmatpush1.bf16.msra.mxu0 %v938
    %2095 = vmatprep.subr.bf16.mxu0 0
    %2096 = vmatpush1.bf16.msra.mxu0 %v939
    %2097 = vmatprep.subr.bf16.mxu0 0
    %2098 = vmatpush1.bf16.msra.mxu0 %v940
    %2099 = vmatprep.subr.bf16.mxu0 0
    %2100 = vmatpush1.bf16.msra.mxu0 %v941
    %2101 = vmatprep.subr.bf16.mxu0 0
    %2102 = vmatpush1.bf16.msra.mxu0 %v942
    %2103 = vmatprep.subr.bf16.mxu0 0
    %2104 = vmatpush1.bf16.msra.mxu0 %v943
    %2105 = vmatprep.subr.bf16.mxu0 0
    %2106 = vmatpush1.bf16.msra.mxu0 %v944
    %2107 = vmatprep.subr.bf16.mxu0 0
    %2108 = vmatpush1.bf16.msra.mxu0 %v945
    %2109 = vmatprep.subr.bf16.mxu0 0
    %2110 = vmatpush1.bf16.msra.mxu0 0
    %2111 = vmatprep.subr.bf16.mxu0 0
    %2112 = vmatpush1.bf16.msra.mxu0 0
    %2113 = vmatprep.subr.bf16.mxu0 0
    %2114 = vmatpush1.bf16.msra.mxu0 0
    %2115 = vmatprep.subr.bf16.mxu0 0
    %2116 = vmatpush1.bf16.msra.mxu0 0
    %2117 = vmatprep.subr.bf16.mxu0 0
    %2118 = vmatpush1.bf16.msra.mxu0 0
    %2119 = vmatprep.subr.bf16.mxu0 0
    %2120 = vmatpush1.bf16.msra.mxu0 0
    %2121 = vmatprep.mubr.bf16.mxu0 %v2087
    %2122 = vmatmul.mubr.bf16.gmra.mrb[0].mxu0 %v2083
    %v2123 = vpop.f32.mrb[0].mxu0
    %v2124 = vadd.f32 0.0, %v2123
    %v2125 = vpop.f32.mrb[0].mxu0
    %v2126 = vpop.f32.mrb[0].mxu0
    %v2127 = vpop.f32.mrb[0].mxu0
    %2128 = vdwg.mxu0
    %v2129 = vlaneseq
    %v2130 = vshrl.u32 %v2129, 7
    %v2131 = vsub.s32 0, %v2130
    %v2132 = vrot.slane %v2059, %v2131
    %v2133 = vlaneseq
    %v2134 = vshrl.u32 %v2133, 7
    %v2135 = vsub.s32 0, %v2134
    %v2136 = vrot.slane %v2060, %v2135
    %v2137 = vlaneseq
    %v2138 = vshrl.u32 %v2137, 7
    %v2139 = vsub.s32 0, %v2138
    %v2140 = vrot.slane %v2061, %v2139
    %v2141 = vlaneseq
    %v2142 = vshrl.u32 %v2141, 7
    %v2143 = vsub.s32 0, %v2142
    %v2144 = vrot.slane %v2062, %v2143
    %v2145 = vmul.f32 %v856, %v2132
    %v2146 = vmul.f32 %v857, %v2136
    %v2147 = vmul.f32 %v858, %v2132
    %v2148 = vmul.f32 %v859, %v2136
    %v2149 = vmul.f32 %v860, %v2132
    %v2150 = vmul.f32 %v861, %v2136
    %v2151 = vmul.f32 %v862, %v2132
    %v2152 = vmul.f32 %v863, %v2136
    %v2153 = vmul.f32 %v864, %v2140
    %v2154 = vmul.f32 %v865, %v2144
    %v2155 = vmul.f32 %v866, %v2140
    %v2156 = vmul.f32 %v867, %v2144
    %v2157 = vmul.f32 %v868, %v2140
    %v2158 = vmul.f32 %v869, %v2144
    %v2159 = vmul.f32 %v870, %v2140
    %v2160 = vmul.f32 %v871, %v2144
    %v2161 = vpack.c.bf16 %v2147, %v2145
    %v2162 = vpack.c.bf16 %v2148, %v2146
    %v2163 = vpack.c.bf16 %v2151, %v2149
    %v2164 = vpack.c.bf16 %v2152, %v2150
    %v2165 = vpack.c.bf16 %v2155, %v2153
    %v2166 = vpack.c.bf16 %v2156, %v2154
    %v2167 = vpack.c.bf16 %v2159, %v2157
    %v2168 = vpack.c.bf16 %v2160, %v2158
    %v2170 = vsel %vm238, %v2162, 0
    %v2173 = vsel %vm238, %v2164, 0
    %v2176 = vsel %vm238, %v2166, 0
    %v2179 = vsel %vm238, %v2168, 0
    %2181 = vmatprep.subr.bf16.mxu0 0
    %2182 = vmatpush1.bf16.msra.mxu0 %v936
    %2183 = vmatprep.subr.bf16.mxu0 0
    %2184 = vmatpush1.bf16.msra.mxu0 %v937
    %2185 = vmatprep.subr.bf16.mxu0 0
    %2186 = vmatpush1.bf16.msra.mxu0 %v938
    %2187 = vmatprep.subr.bf16.mxu0 0
    %2188 = vmatpush1.bf16.msra.mxu0 %v939
    %2189 = vmatprep.subr.bf16.mxu0 0
    %2190 = vmatpush1.bf16.msra.mxu0 %v940
    %2191 = vmatprep.subr.bf16.mxu0 0
    %2192 = vmatpush1.bf16.msra.mxu0 %v941
    %2193 = vmatprep.subr.bf16.mxu0 0
    %2194 = vmatpush1.bf16.msra.mxu0 %v942
    %2195 = vmatprep.subr.bf16.mxu0 0
    %2196 = vmatpush1.bf16.msra.mxu0 %v943
    %2197 = vmatprep.subr.bf16.mxu0 0
    %2198 = vmatpush1.bf16.msra.mxu0 %v944
    %2199 = vmatprep.subr.bf16.mxu0 0
    %2200 = vmatpush1.bf16.msra.mxu0 %v945
    %2201 = vmatprep.subr.bf16.mxu0 0
    %2202 = vmatpush1.bf16.msra.mxu0 0
    %2203 = vmatprep.subr.bf16.mxu0 0
    %2204 = vmatpush1.bf16.msra.mxu0 0
    %2205 = vmatprep.subr.bf16.mxu0 0
    %2206 = vmatpush1.bf16.msra.mxu0 0
    %2207 = vmatprep.subr.bf16.mxu0 0
    %2208 = vmatpush1.bf16.msra.mxu0 0
    %2209 = vmatprep.subr.bf16.mxu0 0
    %2210 = vmatpush1.bf16.msra.mxu0 0
    %2211 = vmatprep.subr.bf16.mxu0 0
    %2212 = vmatpush1.bf16.msra.mxu0 0
    %2213 = vmatprep.mubr.bf16.mxu0 %v2170
    %2214 = vmatmul.mubr.bf16.gmra.mrb[0].mxu0 %v2161
    %v2215 = vpop.f32.mrb[0].mxu0
    %v2216 = vadd.f32 0.0, %v2215
    %v2217 = vpop.f32.mrb[0].mxu0
    %v2218 = vpop.f32.mrb[0].mxu0
    %v2219 = vadd.f32 0.0, %v2218
    %v2220 = vpop.f32.mrb[0].mxu0
    %2221 = vmatprep.mubr.bf16.mxu0 %v2173
    %2222 = vmatmul.mubr.bf16.gmra.mrb[0].mxu0 %v2163
    %v2223 = vpop.f32.mrb[0].mxu0
    %v2224 = vadd.f32 0.0, %v2223
    %v2225 = vpop.f32.mrb[0].mxu0
    %v2226 = vpop.f32.mrb[0].mxu0
    %v2227 = vadd.f32 0.0, %v2226
    %v2228 = vpop.f32.mrb[0].mxu0
    %2229 = vmatprep.mubr.bf16.mxu0 %v2176
    %2230 = vmatmul.mubr.bf16.gmra.mrb[0].mxu0 %v2165
    %v2231 = vpop.f32.mrb[0].mxu0
    %v2232 = vadd.f32 0.0, %v2231
    %v2233 = vpop.f32.mrb[0].mxu0
    %v2234 = vpop.f32.mrb[0].mxu0
    %v2235 = vadd.f32 0.0, %v2234
    %v2236 = vpop.f32.mrb[0].mxu0
    %2237 = vmatprep.mubr.bf16.mxu0 %v2179
    %2238 = vmatmul.mubr.bf16.gmra.mrb[0].mxu0 %v2167
    %v2239 = vpop.f32.mrb[0].mxu0
    %v2240 = vadd.f32 0.0, %v2239
    %v2241 = vpop.f32.mrb[0].mxu0
    %v2242 = vpop.f32.mrb[0].mxu0
    %v2243 = vadd.f32 0.0, %v2242
    %v2244 = vpop.f32.mrb[0].mxu0
    %2245 = vdwg.mxu0
    %v2248 = vunpack.c.l.s4 1966171168
    %v2249 = vunpack.c.0.s8 %v2248
    %v2250 = vlaneseq
    %v2251 = vshrl.u32 %v2250, 7
    %v2252 = vsub.s32 %v2249, %v2251
    %v2253 = vrot.slane %v2124, %v2252
    %v2254 = vcombine.high %v2253, %v2253
    %v2256 = vunpack.c.l.s4 1966171168
    %v2257 = vunpack.c.0.s8 %v2256
    %v2258 = vlaneseq
    %v2259 = vshrl.u32 %v2258, 7
    %v2260 = vsub.s32 %v2257, %v2259
    %v2261 = vrot.slane %v2253, %v2260
    %v2263 = vunpack.c.l.s4 1966171168
    %v2264 = vunpack.c.0.s8 %v2263
    %v2265 = vlaneseq
    %v2266 = vshrl.u32 %v2265, 7
    %v2267 = vsub.s32 %v2264, %v2266
    %v2268 = vrot.slane %v2254, %v2267
    %v2269 = vlaneseq
    %v2270 = vshrl.u32 %v2269, 7
    %v2271 = vsub.s32 0, %v2270
    %v2272 = vrot.slane %v2261, %v2271
    %v2273 = vlaneseq
    %v2274 = vshrl.u32 %v2273, 7
    %v2275 = vsub.s32 0, %v2274
    %v2276 = vrot.slane %v2268, %v2275
    %v2279 = vmul.f32 %v1003, %v2272
    %v2280 = vmul.f32 %v1006, %v2272
    %v2281 = vmul.f32 %v1011, %v2272
    %v2282 = vmul.f32 %v1014, %v2272
    %v2283 = vmul.f32 %v1019, %v2276
    %v2284 = vmul.f32 %v1022, %v2276
    %v2285 = vmul.f32 %v1027, %v2276
    %v2286 = vmul.f32 %v1030, %v2276
    %v2287 = vadd.f32 %v2279, 1e-30
    %v2288 = vadd.f32 %v2280, 1e-30
    %v2289 = vadd.f32 %v2281, 1e-30
    %v2290 = vadd.f32 %v2282, 1e-30
    %v2291 = vadd.f32 %v2283, 1e-30
    %v2292 = vadd.f32 %v2284, 1e-30
    %v2293 = vadd.f32 %v2285, 1e-30
    %v2294 = vadd.f32 %v2286, 1e-30
    %v2295 = vrsqrt.pop %v2287
    %v2296 = vrsqrt.pop %v2288
    %v2297 = vrsqrt.pop %v2289
    %v2298 = vrsqrt.pop %v2290
    %v2299 = vrsqrt.pop %v2291
    %v2300 = vrsqrt.pop %v2292
    %v2301 = vrsqrt.pop %v2293
    %v2302 = vrsqrt.pop %v2294
    %v2303 = vmul.f32 %v2216, %v2295
    %v2304 = vmul.f32 %v2219, %v2296
    %v2305 = vmul.f32 %v2224, %v2297
    %v2306 = vmul.f32 %v2227, %v2298
    %v2307 = vmul.f32 %v2232, %v2299
    %v2308 = vmul.f32 %v2235, %v2300
    %v2309 = vmul.f32 %v2240, %v2301
    %v2310 = vmul.f32 %v2243, %v2302
    %v2311 = vadd.f32 %v1623, %v2303
    %v2312 = vadd.f32 %v1624, %v2304
    %v2313 = vadd.f32 %v1625, %v2305
    %v2314 = vadd.f32 %v1626, %v2306
    %v2315 = vadd.f32 %v1627, %v2307
    %v2316 = vadd.f32 %v1628, %v2308
    %v2317 = vadd.f32 %v1629, %v2309
    %v2318 = vadd.f32 %v1630, %v2310
    %v2319 = vmul.f32 %v2311, 1.442695
    %v2320 = vpow.pop %v2319
    %v2321 = vmul.f32 %v2312, 1.442695
    %v2322 = vpow.pop %v2321
    %v2323 = vmul.f32 %v2313, 1.442695
    %v2324 = vpow.pop %v2323
    %v2325 = vmul.f32 %v2314, 1.442695
    %v2326 = vpow.pop %v2325
    %v2327 = vmul.f32 %v2315, 1.442695
    %v2328 = vpow.pop %v2327
    %v2329 = vmul.f32 %v2316, 1.442695
    %v2330 = vpow.pop %v2329
    %v2331 = vmul.f32 %v2317, 1.442695
    %v2332 = vpow.pop %v2331
    %v2333 = vmul.f32 %v2318, 1.442695
    %v2334 = vpow.pop %v2333
    %v2335 = vsel %vm1033, %v2320, 0.0
    %2336 = vadd.xlane.f32.xlu0 %v2335
    %v2337 = vpop.xlane.xlu0 %2336
    %v2338 = vsel %vm1033, %v2322, 0.0
    %2339 = vadd.xlane.f32.xlu0 %v2338
    %v2340 = vpop.xlane.xlu0 %2339
    %v2341 = vsel %vm1033, %v2324, 0.0
    %2342 = vadd.xlane.f32.xlu0 %v2341
    %v2343 = vpop.xlane.xlu0 %2342
    %v2344 = vsel %vm1033, %v2326, 0.0
    %2345 = vadd.xlane.f32.xlu0 %v2344
    %v2346 = vpop.xlane.xlu0 %2345
    %v2347 = vsel %vm1033, %v2328, 0.0
    %2348 = vadd.xlane.f32.xlu0 %v2347
    %v2349 = vpop.xlane.xlu0 %2348
    %v2350 = vsel %vm1033, %v2330, 0.0
    %2351 = vadd.xlane.f32.xlu0 %v2350
    %v2352 = vpop.xlane.xlu0 %2351
    %v2353 = vsel %vm1033, %v2332, 0.0
    %2354 = vadd.xlane.f32.xlu0 %v2353
    %v2355 = vpop.xlane.xlu0 %2354
    %v2356 = vsel %vm1033, %v2334, 0.0
    %2357 = vadd.xlane.f32.xlu0 %v2356
    %v2358 = vpop.xlane.xlu0 %2357
    %v2359 = vrcp.pop %v2337
    %v2360 = vrcp.pop %v2340
    %v2361 = vrcp.pop %v2343
    %v2362 = vrcp.pop %v2346
    %v2363 = vrcp.pop %v2349
    %v2364 = vrcp.pop %v2352
    %v2365 = vrcp.pop %v2355
    %v2366 = vrcp.pop %v2358
    %v2367 = vmul.f32 %v2320, %v2359
    %v2368 = vmul.f32 %v2322, %v2360
    %v2369 = vmul.f32 %v2324, %v2361
    %v2370 = vmul.f32 %v2326, %v2362
    %v2371 = vmul.f32 %v2328, %v2363
    %v2372 = vmul.f32 %v2330, %v2364
    %v2373 = vmul.f32 %v2332, %v2365
    %v2374 = vmul.f32 %v2334, %v2366
    %v2377 = vunpack.c.l.s4 1966171168
    %v2378 = vunpack.c.0.s8 %v2377
    %v2379 = vlaneseq
    %v2380 = vshrl.u32 %v2379, 7
    %v2381 = vsub.s32 %v2378, %v2380
    %v2382 = vrot.slane %v1985, %v2381
    %v2383 = vcombine.high %v2382, %v2382
    %v2385 = vunpack.c.l.s4 1966171168
    %v2386 = vunpack.c.0.s8 %v2385
    %v2387 = vlaneseq
    %v2388 = vshrl.u32 %v2387, 7
    %v2389 = vsub.s32 %v2386, %v2388
    %v2390 = vrot.slane %v2382, %v2389
    %v2392 = vunpack.c.l.s4 1966171168
    %v2393 = vunpack.c.0.s8 %v2392
    %v2394 = vlaneseq
    %v2395 = vshrl.u32 %v2394, 7
    %v2396 = vsub.s32 %v2393, %v2395
    %v2397 = vrot.slane %v2383, %v2396
    %v2398 = vlaneseq
    %v2399 = vshrl.u32 %v2398, 7
    %v2400 = vsub.s32 0, %v2399
    %v2401 = vrot.slane %v2390, %v2400
    %v2402 = vlaneseq
    %v2403 = vshrl.u32 %v2402, 7
    %v2404 = vsub.s32 0, %v2403
    %v2405 = vrot.slane %v2397, %v2404
    %v2408 = vmul.f32 %v2367, %v2401
    %v2409 = vmul.f32 %v2368, %v2401
    %v2410 = vmul.f32 %v2369, %v2401
    %v2411 = vmul.f32 %v2370, %v2401
    %v2412 = vmul.f32 %v2371, %v2405
    %v2413 = vmul.f32 %v2372, %v2405
    %v2414 = vmul.f32 %v2373, %v2405
    %v2415 = vmul.f32 %v2374, %v2405
    %v2416 = vpack.c.bf16 %v2409, %v2408
    %v2417 = vpack.c.bf16 %v2411, %v2410
    %v2418 = vpack.c.bf16 %v2413, %v2412
    %v2419 = vpack.c.bf16 %v2415, %v2414
    %v2421 = vsel %vm1033, %v2416, 0
    %v2424 = vsel %vm1033, %v2417, 0
    %v2427 = vsel %vm1033, %v2418, 0
    %v2430 = vsel %vm1033, %v2419, 0
    %2432 = vmatprep.subr.bf16.mxu0 %v1055
    %2433 = vmatpush1.bf16.msra.mxu0 %v1052
    %2434 = vmatprep.subr.bf16.mxu0 0
    %2435 = vmatpush1.bf16.msra.mxu0 0
    %2436 = vmatprep.subr.bf16.mxu0 0
    %2437 = vmatpush1.bf16.msra.mxu0 0
    %2438 = vmatprep.subr.bf16.mxu0 0
    %2439 = vmatpush1.bf16.msra.mxu0 0
    %2440 = vmatprep.subr.bf16.mxu0 0
    %2441 = vmatpush1.bf16.msra.mxu0 0
    %2442 = vmatprep.subr.bf16.mxu0 0
    %2443 = vmatpush1.bf16.msra.mxu0 0
    %2444 = vmatprep.subr.bf16.mxu0 0
    %2445 = vmatpush1.bf16.msra.mxu0 0
    %2446 = vmatprep.subr.bf16.mxu0 0
    %2447 = vmatpush1.bf16.msra.mxu0 0
    %2448 = vmatprep.subr.bf16.mxu0 0
    %2449 = vmatpush1.bf16.msra.mxu0 0
    %2450 = vmatprep.subr.bf16.mxu0 0
    %2451 = vmatpush1.bf16.msra.mxu0 0
    %2452 = vmatprep.subr.bf16.mxu0 0
    %2453 = vmatpush1.bf16.msra.mxu0 0
    %2454 = vmatprep.subr.bf16.mxu0 0
    %2455 = vmatpush1.bf16.msra.mxu0 0
    %2456 = vmatprep.subr.bf16.mxu0 0
    %2457 = vmatpush1.bf16.msra.mxu0 0
    %2458 = vmatprep.subr.bf16.mxu0 0
    %2459 = vmatpush1.bf16.msra.mxu0 0
    %2460 = vmatprep.subr.bf16.mxu0 0
    %2461 = vmatpush1.bf16.msra.mxu0 0
    %2462 = vmatprep.subr.bf16.mxu0 0
    %2463 = vmatpush1.bf16.msra.mxu0 0
    %2464 = vmatprep.mubr.bf16.mxu0 0
    %2465 = vmatmul.mubr.bf16.gmra.mrb[0].mxu0 %v2421
    %v2466 = vpop.f32.mrb[0].mxu0
    %v2467 = vadd.f32 0.0, %v2466
    %v2468 = vpop.f32.mrb[0].mxu0
    %v2469 = vadd.f32 0.0, %v2468
    %v2470 = vpop.f32.mrb[0].mxu0
    %v2471 = vadd.f32 0.0, %v2470
    %v2472 = vpop.f32.mrb[0].mxu0
    %v2473 = vadd.f32 0.0, %v2472
    %2474 = vmatprep.mubr.bf16.mxu0 0
    %2475 = vmatmul.mubr.bf16.gmra.mrb[0].mxu0 %v2424
    %v2476 = vpop.f32.mrb[0].mxu0
    %v2477 = vadd.f32 0.0, %v2476
    %v2478 = vpop.f32.mrb[0].mxu0
    %v2479 = vadd.f32 0.0, %v2478
    %v2480 = vpop.f32.mrb[0].mxu0
    %v2481 = vadd.f32 0.0, %v2480
    %v2482 = vpop.f32.mrb[0].mxu0
    %v2483 = vadd.f32 0.0, %v2482
    %2484 = vmatprep.mubr.bf16.mxu0 0
    %2485 = vmatmul.mubr.bf16.gmra.mrb[0].mxu0 %v2427
    %v2486 = vpop.f32.mrb[0].mxu0
    %v2487 = vadd.f32 0.0, %v2486
    %v2488 = vpop.f32.mrb[0].mxu0
    %v2489 = vadd.f32 0.0, %v2488
    %v2490 = vpop.f32.mrb[0].mxu0
    %v2491 = vadd.f32 0.0, %v2490
    %v2492 = vpop.f32.mrb[0].mxu0
    %v2493 = vadd.f32 0.0, %v2492
    %2494 = vmatprep.mubr.bf16.mxu0 0
    %2495 = vmatmul.mubr.bf16.gmra.mrb[0].mxu0 %v2430
    %v2496 = vpop.f32.mrb[0].mxu0
    %v2497 = vadd.f32 0.0, %v2496
    %v2498 = vpop.f32.mrb[0].mxu0
    %v2499 = vadd.f32 0.0, %v2498
    %v2500 = vpop.f32.mrb[0].mxu0
    %v2501 = vadd.f32 0.0, %v2500
    %v2502 = vpop.f32.mrb[0].mxu0
    %v2503 = vadd.f32 0.0, %v2502
    %2504 = vdwg.mxu0
    %v2505 = vmul.f32 %v2467, %v609
    %v2506 = vmul.f32 %v2469, %v611
    %v2507 = vmul.f32 %v2471, %v613
    %v2508 = vmul.f32 %v2473, %v615
    %v2509 = vmul.f32 %v2477, %v619
    %v2510 = vmul.f32 %v2479, %v621
    %v2511 = vmul.f32 %v2481, %v623
    %v2512 = vmul.f32 %v2483, %v625
    %v2513 = vmul.f32 %v2487, %v629
    %v2514 = vmul.f32 %v2489, %v631
    %v2515 = vmul.f32 %v2491, %v633
    %v2516 = vmul.f32 %v2493, %v635
    %v2517 = vmul.f32 %v2497, %v639
    %v2518 = vmul.f32 %v2499, %v641
    %v2519 = vmul.f32 %v2501, %v643
    %v2520 = vmul.f32 %v2503, %v645
    %v2521 = vadd.f32 %v2505, %v2507
    %v2522 = vadd.f32 %v2521, %v2509
    %v2523 = vadd.f32 %v2522, %v2511
    %v2524 = vrot.slane %v2523, 4
    %v2525 = vadd.f32 %v2523, %v2524
    %v2526 = vrot.slane %v2525, 2
    %v2527 = vadd.f32 %v2525, %v2526
    %v2528 = vrot.slane %v2527, 1
    %v2529 = vadd.f32 %v2527, %v2528
    %v2530 = vsel %vm238, %v2506, 0.0
    %v2531 = vsel %vm238, %v2508, 0.0
    %v2532 = vadd.f32 %v2530, %v2531
    %v2533 = vsel %vm238, %v2510, 0.0
    %v2534 = vadd.f32 %v2532, %v2533
    %v2535 = vsel %vm238, %v2512, 0.0
    %v2536 = vadd.f32 %v2534, %v2535
    %v2537 = vrot.slane %v2536, 4
    %v2538 = vadd.f32 %v2536, %v2537
    %v2539 = vrot.slane %v2538, 2
    %v2540 = vadd.f32 %v2538, %v2539
    %v2541 = vrot.slane %v2540, 1
    %v2542 = vadd.f32 %v2540, %v2541
    %v2543 = vadd.f32 %v2513, %v2515
    %v2544 = vadd.f32 %v2543, %v2517
    %v2545 = vadd.f32 %v2544, %v2519
    %v2546 = vrot.slane %v2545, 4
    %v2547 = vadd.f32 %v2545, %v2546
    %v2548 = vrot.slane %v2547, 2
    %v2549 = vadd.f32 %v2547, %v2548
    %v2550 = vrot.slane %v2549, 1
    %v2551 = vadd.f32 %v2549, %v2550
    %v2552 = vsel %vm238, %v2514, 0.0
    %v2553 = vsel %vm238, %v2516, 0.0
    %v2554 = vadd.f32 %v2552, %v2553
    %v2555 = vsel %vm238, %v2518, 0.0
    %v2556 = vadd.f32 %v2554, %v2555
    %v2557 = vsel %vm238, %v2520, 0.0
    %v2558 = vadd.f32 %v2556, %v2557
    %v2559 = vrot.slane %v2558, 4
    %v2560 = vadd.f32 %v2558, %v2559
    %v2561 = vrot.slane %v2560, 2
    %v2562 = vadd.f32 %v2560, %v2561
    %v2563 = vrot.slane %v2562, 1
    %v2564 = vadd.f32 %v2562, %v2563
    %v2565 = vmul.f32 %v2529, %v2529
    %v2566 = vmul.f32 %v2542, %v2542
    %v2567 = vmul.f32 %v2551, %v2551
    %v2568 = vmul.f32 %v2564, %v2564
    %v2569 = vpack.c.bf16 %v2565, %v2565
    %v2570 = vpack.c.bf16 %v2566, %v2566
    %v2571 = vpack.c.bf16 %v2567, %v2567
    %v2572 = vpack.c.bf16 %v2568, %v2568
    %v2577 = vunpack.c.l.b16 %v2569
    %v2578 = vunpack.c.l.b16 %v2570
    %v2579 = vunpack.c.l.b16 %v2571
    %v2580 = vunpack.c.l.b16 %v2572
    %v2581 = vsel %vm1206, %v2579, %v2577
    %v2582 = vsel %vm1206, %v2580, %v2578
    %v2583 = vpack.c.b16 %v2581, %v2581
    %v2584 = vpack.c.b16 %v2582, %v2582
    %v2587 = vsel %vm238, %v2584, 0
    %2589 = vmatprep.subr.bf16.mxu0 %v716
    %2590 = vmatpush1.bf16.msra.mxu0 %v715
    %2591 = vmatprep.subr.bf16.mxu0 %v718
    %2592 = vmatpush1.bf16.msra.mxu0 %v717
    %2593 = vmatprep.subr.bf16.mxu0 %v720
    %2594 = vmatpush1.bf16.msra.mxu0 %v719
    %2595 = vmatprep.subr.bf16.mxu0 %v722
    %2596 = vmatpush1.bf16.msra.mxu0 %v721
    %2597 = vmatprep.subr.bf16.mxu0 %v724
    %2598 = vmatpush1.bf16.msra.mxu0 %v723
    %2599 = vmatprep.subr.bf16.mxu0 %v726
    %2600 = vmatpush1.bf16.msra.mxu0 %v725
    %2601 = vmatprep.subr.bf16.mxu0 %v728
    %2602 = vmatpush1.bf16.msra.mxu0 %v727
    %2603 = vmatprep.subr.bf16.mxu0 %v730
    %2604 = vmatpush1.bf16.msra.mxu0 %v729
    %2605 = vmatprep.subr.bf16.mxu0 %v732
    %2606 = vmatpush1.bf16.msra.mxu0 %v731
    %2607 = vmatprep.subr.bf16.mxu0 %v734
    %2608 = vmatpush1.bf16.msra.mxu0 %v733
    %2609 = vmatprep.subr.bf16.mxu0 0
    %2610 = vmatpush1.bf16.msra.mxu0 0
    %2611 = vmatprep.subr.bf16.mxu0 0
    %2612 = vmatpush1.bf16.msra.mxu0 0
    %2613 = vmatprep.subr.bf16.mxu0 0
    %2614 = vmatpush1.bf16.msra.mxu0 0
    %2615 = vmatprep.subr.bf16.mxu0 0
    %2616 = vmatpush1.bf16.msra.mxu0 0
    %2617 = vmatprep.subr.bf16.mxu0 0
    %2618 = vmatpush1.bf16.msra.mxu0 0
    %2619 = vmatprep.subr.bf16.mxu0 0
    %2620 = vmatpush1.bf16.msra.mxu0 0
    %2621 = vmatprep.mubr.bf16.mxu0 %v2587
    %2622 = vmatmul.mubr.bf16.gmra.mrb[0].mxu0 %v2583
    %v2623 = vpop.f32.mrb[0].mxu0
    %v2624 = vadd.f32 0.0, %v2623
    %v2625 = vpop.f32.mrb[0].mxu0
    %v2626 = vadd.f32 0.0, %v2625
    %v2627 = vpop.f32.mrb[0].mxu0
    %v2628 = vpop.f32.mrb[0].mxu0
    %2629 = vdwg.mxu0
    %v2630 = vadd.f32 %v2624, 1.0
    %v2631 = vadd.f32 %v2626, 1.0
    %v2632 = vrcp.pop %v2630
    %v2633 = vrcp.pop %v2631
    %v2634 = vrsqrt.pop %v2624
    %v2635 = vmul.f32 %v2624, %v2634
    %vm2636 = vcmp.eq.f32.partialorder %v2624, inf
    %v2637 = vsel %vm2636, %v2624, %v2635
    %vm2638 = vcmp.eq.f32.partialorder %v2624, 0.0
    %v2639 = vand.u32 %v2624, 2147483648
    %v2640 = vsel %vm2638, %v2639, %v2637
    %v2641 = vrsqrt.pop %v2626
    %v2642 = vmul.f32 %v2626, %v2641
    %vm2643 = vcmp.eq.f32.partialorder %v2626, inf
    %v2644 = vsel %vm2643, %v2626, %v2642
    %vm2645 = vcmp.eq.f32.partialorder %v2626, 0.0
    %v2646 = vand.u32 %v2626, 2147483648
    %v2647 = vsel %vm2645, %v2646, %v2644
    %v2650 = vrot.slane %v2640, 1
    %v2651 = vrot.slane %v2647, 1
    %v2656 = vmul.f32 %v2529, %v2640
    %v2657 = vmul.f32 %v2542, %v2647
    %v2658 = vmul.f32 %v2551, %v2650
    %v2659 = vmul.f32 %v2564, %v2651
    %v2662 = vrot.slane %v2632, 1
    %v2663 = vrot.slane %v2633, 1
    %v2668 = vmul.f32 %v2656, %v2632
    %v2669 = vmul.f32 %v2657, %v2633
    %v2670 = vmul.f32 %v2658, %v2662
    %v2671 = vmul.f32 %v2659, %v2663
    %v2676 = vcombine.low %v2668, %v2669
    %v2678 = vunpack.c.l.s4 1983009808
    %v2679 = vunpack.c.0.s8 %v2678
    %v2680 = vlaneseq
    %v2681 = vshrl.u32 %v2680, 7
    %v2682 = vsub.s32 %v2679, %v2681
    %v2683 = vrot.slane %v2676, %v2682
    %v2684 = vcombine.low %v2670, %v2671
    %v2686 = vunpack.c.l.s4 1983009808
    %v2687 = vunpack.c.0.s8 %v2686
    %v2688 = vlaneseq
    %v2689 = vshrl.u32 %v2688, 7
    %v2690 = vsub.s32 %v2687, %v2689
    %v2691 = vrot.slane %v2684, %v2690
    %vm2692 = vcmask 1044484
    %v2693 = vsel %vm2692, %v2683, %v2683
    %vm2694 = vcmask 1046534
    %v2695 = vsel %vm2694, %v2683, %v2693
    %v2696 = vrot.slane %v2691, 7
    %v2697 = vsel %vm1206, %v2696, %v2695
    %vm2698 = vcmask 1043459
    %v2699 = vsel %vm2698, %v2696, %v2697
    %vm2700 = vcmask 1045509
    %v2701 = vsel %vm2700, %v2696, %v2699
    %vm2702 = vcmask 1047559
    %v2703 = vsel %vm2702, %v2696, %v2701
    %vm2705 = vcmask 1041408
    %vm2706 = vcmask 257026
    %vm2707 = vmor %vm2706, %vm2705
    %2708 = vst.msk [vmem:[#allocation2] sm:$0xf] %vm2707, %v2703
    %v2713 = vcombine.low %v1294, %v1295
    %v2715 = vunpack.c.l.s4 1983009808
    %v2716 = vunpack.c.0.s8 %v2715
    %v2717 = vlaneseq
    %v2718 = vshrl.u32 %v2717, 7
    %v2719 = vsub.s32 %v2716, %v2718
    %v2720 = vrot.slane %v2713, %v2719
    %v2721 = vcombine.low %v1296, %v1297
    %v2723 = vunpack.c.l.s4 1983009808
    %v2724 = vunpack.c.0.s8 %v2723
    %v2725 = vlaneseq
    %v2726 = vshrl.u32 %v2725, 7
    %v2727 = vsub.s32 %v2724, %v2726
    %v2728 = vrot.slane %v2721, %v2727
    %v2729 = vsel %vm2692, %v2720, %v2720
    %v2730 = vsel %vm2694, %v2720, %v2729
    %v2731 = vrot.slane %v2728, 7
    %v2732 = vsel %vm1206, %v2731, %v2730
    %v2733 = vsel %vm2698, %v2731, %v2732
    %v2734 = vsel %vm2700, %v2731, %v2733
    %v2735 = vsel %vm2702, %v2731, %v2734
    %2737 = vst.msk [vmem:[#allocation4] sm:$0xf] %vm2707, %v2735
    %v2742 = vcombine.low %v1939, %v1940
    %v2744 = vunpack.c.l.s4 1983009808
    %v2745 = vunpack.c.0.s8 %v2744
    %v2746 = vlaneseq
    %v2747 = vshrl.u32 %v2746, 7
    %v2748 = vsub.s32 %v2745, %v2747
    %v2749 = vrot.slane %v2742, %v2748
    %v2750 = vcombine.low %v1941, %v1942
    %v2752 = vunpack.c.l.s4 1983009808
    %v2753 = vunpack.c.0.s8 %v2752
    %v2754 = vlaneseq
    %v2755 = vshrl.u32 %v2754, 7
    %v2756 = vsub.s32 %v2753, %v2755
    %v2757 = vrot.slane %v2750, %v2756
    %v2758 = vsel %vm2692, %v2749, %v2749
    %v2759 = vsel %vm2694, %v2749, %v2758
    %v2760 = vrot.slane %v2757, 7
    %v2761 = vsel %vm1206, %v2760, %v2759
    %v2762 = vsel %vm2698, %v2760, %v2761
    %v2763 = vsel %vm2700, %v2760, %v2762
    %v2764 = vsel %vm2702, %v2760, %v2763
    %2766 = vst.msk [vmem:[#allocation6] sm:$0xf] %vm2707, %v2764
    // Predicated region
    $region26: #{tpu_custom_call.1} parent=1 // pred_check
      _
    $region27: #{tpu_custom_call.1} parent=1 // pred_check_branch
      %2768 = sbr.rel (0) target = $region29
    $region28: #{tpu_custom_call.1} parent=1 // pred_region
      %s2770 = ssub.s32 64, 64
      %2771 = vsyncadd [#allocation3], %s2770
      %s2773 = sshll.u32 [#allocation2], 4
      %s2774 = int_to_ptr.vmem [resolvable:$true] %s2773
      %2776 = dma.vmem_to_hbm [thread:$0]  %s2774, 64, %s6, [#allocation3]
    $region29: #{tpu_custom_call.1} parent=1 // pred_fallthru
      _
    // Predicated region
    $region30: #{tpu_custom_call.1} parent=1 // pred_check
      _
    $region31: #{tpu_custom_call.1} parent=1 // pred_check_branch
      %2778 = sbr.rel (0) target = $region33
    $region32: #{tpu_custom_call.1} parent=1 // pred_region
      %s2780 = ssub.s32 64, 64
      %2781 = vsyncadd [#allocation5], %s2780
      %s2783 = sshll.u32 [#allocation4], 4
      %s2784 = int_to_ptr.vmem [resolvable:$true] %s2783
      %2786 = dma.vmem_to_hbm [thread:$0]  %s2784, 64, %s7, [#allocation5]
    $region33: #{tpu_custom_call.1} parent=1 // pred_fallthru
      _
    // Predicated region
    $region34: #{tpu_custom_call.1} parent=1 // pred_check
      _
    $region35: #{tpu_custom_call.1} parent=1 // pred_check_branch
      %2788 = sbr.rel (0) target = $region37
    $region36: #{tpu_custom_call.1} parent=1 // pred_region
      %s2790 = ssub.s32 64, 64
      %2791 = vsyncadd [#allocation5], %s2790
      %s2793 = sshll.u32 [#allocation6], 4
      %s2794 = int_to_ptr.vmem [resolvable:$true] %s2793
      %2796 = dma.vmem_to_hbm [thread:$0]  %s2794, 64, %s8, [#allocation5]
    $region37: #{tpu_custom_call.1} parent=1 // pred_fallthru
      _
    // Predicated region
    $region38: #{tpu_custom_call.1} parent=1 // pred_check
      _
    $region39: #{tpu_custom_call.1} parent=1 // pred_check_branch
      %2798 = sbr.rel (0) target = $region41
    $region40: #{tpu_custom_call.1} parent=1 // pred_region
      %2799 = dma.done [#allocation3], 64
    $region41: #{tpu_custom_call.1} parent=1 // pred_fallthru
      _
    // Predicated region
    $region42: #{tpu_custom_call.1} parent=1 // pred_check
      _
    $region43: #{tpu_custom_call.1} parent=1 // pred_check_branch
      %2801 = sbr.rel (0) target = $region45
    $region44: #{tpu_custom_call.1} parent=1 // pred_region
      %2802 = dma.done [#allocation5], 64
    $region45: #{tpu_custom_call.1} parent=1 // pred_fallthru
      _
    // Predicated region
    $region46: #{tpu_custom_call.1} parent=1 // pred_check
      _
    $region47: #{tpu_custom_call.1} parent=1 // pred_check_branch
      %2804 = sbr.rel (0) target = $region49
    $region48: #{tpu_custom_call.1} parent=1 // pred_region
      %2805 = dma.done [#allocation5], 64
    $region49: #{tpu_custom_call.1} parent=1 // pred_fallthru
      _
    %2806 = vsyncpa [#allocation3], 1
    %2807 = vsyncpa [#allocation5], 1

</llo_original>
